<compile_context>
chip_gen: v7x
topology: tpu7x:2x2x1
jax: 0.10.0
libtpu: 0.0.40
codegen_flags: <defaults>
</compile_context>

<pallas_src>
import math

import jax
import jax.numpy as jnp
from jax.experimental import pallas as pl
from jax.experimental.pallas import tpu as pltpu


def attention_kernel(x_ref, xt_ref, wtt_ref, wpg_ref, sel_ref, wo_ref, o_ref):
    # x_ref:   (1, C, HW)        channels-first sample (lane axis = H*W)
    # xt_ref:  (1, HW, C)        pixels-first copy, used only for theta
    # wtt_ref: (C, C//8)         theta.weight^T
    # wpg_ref: (C//8 + C//2, C)  [phi.weight; g.weight] stacked
    # sel_ref: (4, HW, HW//4)    one-hot 2x2-maxpool tap-selection matrices
    # wo_ref:  (C, C//2)         gamma * o.weight (gamma folded in)
    # o_ref:   (1, C, HW)
    C = x_ref.shape[1]
    C8 = C // 8

    x = x_ref[0].astype(jnp.float32)       # (C, HW)
    xt = xt_ref[0].astype(jnp.float32)     # (HW, C)

    # theta^T: (HW, C//8) -- "query" operand with pixels on the sublane axis.
    theta_t = jnp.dot(xt, wtt_ref[...], preferred_element_type=jnp.float32)

    # phi and g 1x1 convs fused into one matmul: (C//8+C//2, C) @ (C, HW).
    pg = jnp.dot(wpg_ref[...], x, preferred_element_type=jnp.float32)

    # 2x2 / stride-2 max pooling along the flattened spatial (lane) axis,
    # expressed as a max over four one-hot selection matmuls on the MXU.
    pooled = jnp.dot(pg, sel_ref[0], preferred_element_type=jnp.float32)
    for k in range(1, 4):
        pooled = jnp.maximum(
            pooled, jnp.dot(pg, sel_ref[k], preferred_element_type=jnp.float32))
    phi_p = pooled[:C8, :]                 # (C//8, HW//4)
    g_p = pooled[C8:, :]                   # (C//2, HW//4)

    # Attention scores: (HW, HW//4) = theta^T @ phi_pooled   (NN matmul).
    attn = jnp.dot(theta_t, phi_p, preferred_element_type=jnp.float32)

    # Softmax over pooled positions (last / lane axis).
    m = jnp.max(attn, axis=-1, keepdims=True)
    e = jnp.exp(attn - m)
    denom = jnp.sum(e, axis=-1, keepdims=True)
    beta = e * pl.reciprocal(denom)        # (HW, HW//4)

    # o_mid = g_pooled @ beta^T : contract the pooled axis (NT matmul).
    o_mid = jax.lax.dot_general(
        g_p, beta, (((1,), (1,)), ((), ())),
        preferred_element_type=jnp.float32)             # (C//2, HW)

    # Final 1x1 conv (gamma already folded into wo) + residual.
    o = jnp.dot(wo_ref[...], o_mid, preferred_element_type=jnp.float32)  # (C, HW)
    o_ref[0] = (o + x).astype(o_ref.dtype)


def attention_pallas(x, theta_w, phi_w, g_w, o_w, gamma):
    """x: (B, C, H, W); conv weights in PyTorch OIHW layout; gamma scalar."""
    B, C, H, W = x.shape
    HW = H * W
    HW4 = HW // 4
    C8, C2 = C // 8, C // 2

    x_cf = x.reshape(B, C, HW)                     # channels-first (free reshape)
    x_pf = jnp.transpose(x_cf, (0, 2, 1))          # pixels-first, only for theta
    # TODO(synk): if the surrounding model can hand x over in (B, HW, C) layout,
    # this single extra XLA transpose of the input disappears entirely.

    wt_t = jnp.transpose(theta_w.reshape(C8, C)).astype(jnp.float32)      # (C, C8)
    wpg = jnp.concatenate(
        [phi_w.reshape(C8, C), g_w.reshape(C2, C)], axis=0).astype(jnp.float32)
    wo = (gamma * o_w.reshape(C, C2)).astype(jnp.float32)                 # gamma folded

    # One-hot tap-selection matrices implementing 2x2 stride-2 max pooling:
    # sel[k][p, j] == 1 iff flat pixel p is tap k of pooled window j.
    # TODO(synk): sel is O(HW^2); for large feature maps switch to a
    # roll-and-max formulation plus a single top-left gather matmul.
    j = jnp.arange(HW4)
    ph, pw = j // (W // 2), j % (W // 2)
    rows = jnp.arange(HW)[:, None]
    taps = []
    for dy in (0, 1):
        for dx in (0, 1):
            src = (2 * ph + dy) * W + (2 * pw + dx)
            taps.append((rows == src[None, :]).astype(jnp.float32))
    sel = jnp.stack(taps, axis=0)                  # (4, HW, HW4)

    out = pl.pallas_call(
        attention_kernel,
        out_shape=jax.ShapeDtypeStruct((B, C, HW), x.dtype),
        grid_spec=pltpu.PrefetchScalarGridSpec(
            num_scalar_prefetch=0,
            grid=(B,),
            in_specs=[
                pl.BlockSpec((1, C, HW), lambda b: (b, 0, 0)),
                pl.BlockSpec((1, HW, C), lambda b: (b, 0, 0)),
                pl.BlockSpec((C, C8), lambda b: (0, 0)),
                pl.BlockSpec((C8 + C2, C), lambda b: (0, 0)),
                pl.BlockSpec((4, HW, HW4), lambda b: (0, 0, 0)),
                pl.BlockSpec((C, C2), lambda b: (0, 0)),
            ],
            out_specs=pl.BlockSpec((1, C, HW), lambda b: (b, 0, 0)),
        ),
        compiler_params=pltpu.CompilerParams(
            dimension_semantics=("parallel",)),
    )(x_cf, x_pf, wt_t, wpg, sel, wo)

    return out.reshape(B, C, H, W)


def attention_reference(x, theta_w, phi_w, g_w, o_w, gamma):
    """Pure-JAX reference matching the PyTorch forward."""
    B, C, H, W = x.shape
    C8, C2 = C // 8, C // 2
    hp = jax.lax.Precision.HIGHEST

    def conv1x1(inp, w):                       # w: (Cout, Cin, 1, 1)
        return jnp.einsum("oi,bihw->bohw", w[:, :, 0, 0], inp, precision=hp)

    def maxpool2x2(inp):
        b, c, h, w = inp.shape
        return inp.reshape(b, c, h // 2, 2, w // 2, 2).max(axis=(3, 5))

    theta = conv1x1(x, theta_w).reshape(B, C8, H * W)
    phi = maxpool2x2(conv1x1(x, phi_w)).reshape(B, C8, H * W // 4)
    g = maxpool2x2(conv1x1(x, g_w)).reshape(B, C2, H * W // 4)

    attn = jnp.einsum("bci,bcj->bij", theta, phi, precision=hp)   # (B, HW, HW/4)
    beta = jax.nn.softmax(attn, axis=-1)
    o_mid = jnp.einsum("bcj,bij->bci", g, beta, precision=hp)     # (B, C/2, HW)
    o = conv1x1(o_mid.reshape(B, C2, H, W), o_w)
    return gamma * o + x


if __name__ == "__main__":
    B, C, H, W = 2, 64, 16, 16                 # ch must be divisible by 8
    C8, C2 = C // 8, C // 2

    key = jax.random.PRNGKey(0)
    k1, k2, k3, k4, k5 = jax.random.split(key, 5)

    theta_w = jax.random.normal(k1, (C8, C, 1, 1), jnp.float32) / math.sqrt(C)
    phi_w = jax.random.normal(k2, (C8, C, 1, 1), jnp.float32) / math.sqrt(C)
    g_w = jax.random.normal(k3, (C2, C, 1, 1), jnp.float32) / math.sqrt(C)
    o_w = jax.random.normal(k4, (C, C2, 1, 1), jnp.float32) / math.sqrt(C2)
    # PyTorch initializes gamma to 0 (forward == identity); use a nonzero value
    # so the attention path is actually exercised by the check.
    gamma = jnp.float32(0.75)

    x = jax.random.normal(k5, (B, C, H, W), jnp.float32)

    out = jax.block_until_ready(
        attention_pallas(x, theta_w, phi_w, g_w, o_w, gamma))
    ref = jax.block_until_ready(
        attention_reference(x, theta_w, phi_w, g_w, o_w, gamma))

    assert out.shape == (B, C, H, W)
    max_err = float(jnp.max(jnp.abs(out - ref)))
    assert jnp.allclose(out, ref, rtol=5e-3, atol=5e-3), max_err

    print("KERNEL_OK")
</pallas_src>

<mosaic_0001>
module attributes {stable_mosaic.version = 11 : i64} {
  func.func @attention_kernel(%arg0: i32, %arg1: memref<1x64x256xf32, #tpu.memory_space<vmem>>, %arg2: memref<1x256x64xf32, #tpu.memory_space<vmem>>, %arg3: memref<64x8xf32, #tpu.memory_space<vmem>>, %arg4: memref<40x64xf32, #tpu.memory_space<vmem>>, %arg5: memref<4x256x64xf32, #tpu.memory_space<vmem>>, %arg6: memref<64x32xf32, #tpu.memory_space<vmem>>, %arg7: memref<1x64x256xf32, #tpu.memory_space<vmem>>) attributes {dimension_semantics = [#tpu.dimension_semantics<parallel>], iteration_bounds = array<i64: 2>, scalar_prefetch = 0 : i64, scratch_operands = 0 : i64, tpu.core_type = #tpu.core_type<tc>, window_params = [{transform_indices = @transform_0, window_bounds = array<i64: 1, 64, 256>}, {transform_indices = @transform_1, window_bounds = array<i64: 1, 256, 64>}, {pipeline_mode = #tpu.pipeline_mode<synchronous>, transform_indices = @transform_2, window_bounds = array<i64: 64, 8>}, {pipeline_mode = #tpu.pipeline_mode<synchronous>, transform_indices = @transform_3, window_bounds = array<i64: 40, 64>}, {pipeline_mode = #tpu.pipeline_mode<synchronous>, transform_indices = @transform_4, window_bounds = array<i64: 4, 256, 64>}, {pipeline_mode = #tpu.pipeline_mode<synchronous>, transform_indices = @transform_5, window_bounds = array<i64: 64, 32>}, {transform_indices = @transform_6, window_bounds = array<i64: 1, 64, 256>}]} {
    %c0 = arith.constant 0 : index
    %c0_0 = arith.constant 0 : index
    %c0_1 = arith.constant 0 : index
    %0 = vector.load %arg1[%c0, %c0_0, %c0_1] : memref<1x64x256xf32, #tpu.memory_space<vmem>>, vector<1x64x256xf32>
    %1 = vector.shape_cast %0 : vector<1x64x256xf32> to vector<64x256xf32>
    %c0_2 = arith.constant 0 : index
    %c0_3 = arith.constant 0 : index
    %c0_4 = arith.constant 0 : index
    %2 = vector.load %arg2[%c0_2, %c0_3, %c0_4] : memref<1x256x64xf32, #tpu.memory_space<vmem>>, vector<1x256x64xf32>
    %3 = vector.shape_cast %2 : vector<1x256x64xf32> to vector<256x64xf32>
    %c0_5 = arith.constant 0 : index
    %c0_6 = arith.constant 0 : index
    %4 = vector.load %arg3[%c0_5, %c0_6] : memref<64x8xf32, #tpu.memory_space<vmem>>, vector<64x8xf32>
    %cst = arith.constant dense<0.000000e+00> : vector<256x8xf32>
    %5 = tpu.matmul %3, %4, %cst {dimension_numbers = #tpu.dot_dimension_numbers<[1], [0], [0], [1], [0, 0, 1, 1], [], []>} : vector<256x64xf32>, vector<64x8xf32>, vector<256x8xf32> -> vector<256x8xf32>
    %c0_7 = arith.constant 0 : index
    %c0_8 = arith.constant 0 : index
    %6 = vector.load %arg4[%c0_7, %c0_8] : memref<40x64xf32, #tpu.memory_space<vmem>>, vector<40x64xf32>
    %cst_9 = arith.constant dense<0.000000e+00> : vector<40x256xf32>
    %7 = tpu.matmul %6, %1, %cst_9 {dimension_numbers = #tpu.dot_dimension_numbers<[1], [0], [0], [1], [0, 0, 1, 1], [], []>} : vector<40x64xf32>, vector<64x256xf32>, vector<40x256xf32> -> vector<40x256xf32>
    %c0_10 = arith.constant 0 : index
    %c0_11 = arith.constant 0 : index
    %c0_12 = arith.constant 0 : index
    %8 = vector.load %arg5[%c0_10, %c0_11, %c0_12] : memref<4x256x64xf32, #tpu.memory_space<vmem>>, vector<1x256x64xf32>
    %9 = vector.shape_cast %8 : vector<1x256x64xf32> to vector<256x64xf32>
    %cst_13 = arith.constant dense<0.000000e+00> : vector<40x64xf32>
    %10 = tpu.matmul %7, %9, %cst_13 {dimension_numbers = #tpu.dot_dimension_numbers<[1], [0], [0], [1], [0, 0, 1, 1], [], []>} : vector<40x256xf32>, vector<256x64xf32>, vector<40x64xf32> -> vector<40x64xf32>
    %c1 = arith.constant 1 : index
    %c0_14 = arith.constant 0 : index
    %c0_15 = arith.constant 0 : index
    %11 = vector.load %arg5[%c1, %c0_14, %c0_15] : memref<4x256x64xf32, #tpu.memory_space<vmem>>, vector<1x256x64xf32>
    %12 = vector.shape_cast %11 : vector<1x256x64xf32> to vector<256x64xf32>
    %cst_16 = arith.constant dense<0.000000e+00> : vector<40x64xf32>
    %13 = tpu.matmul %7, %12, %cst_16 {dimension_numbers = #tpu.dot_dimension_numbers<[1], [0], [0], [1], [0, 0, 1, 1], [], []>} : vector<40x256xf32>, vector<256x64xf32>, vector<40x64xf32> -> vector<40x64xf32>
    %14 = arith.maximumf %10, %13 : vector<40x64xf32>
    %c2 = arith.constant 2 : index
    %c0_17 = arith.constant 0 : index
    %c0_18 = arith.constant 0 : index
    %15 = vector.load %arg5[%c2, %c0_17, %c0_18] : memref<4x256x64xf32, #tpu.memory_space<vmem>>, vector<1x256x64xf32>
    %16 = vector.shape_cast %15 : vector<1x256x64xf32> to vector<256x64xf32>
    %cst_19 = arith.constant dense<0.000000e+00> : vector<40x64xf32>
    %17 = tpu.matmul %7, %16, %cst_19 {dimension_numbers = #tpu.dot_dimension_numbers<[1], [0], [0], [1], [0, 0, 1, 1], [], []>} : vector<40x256xf32>, vector<256x64xf32>, vector<40x64xf32> -> vector<40x64xf32>
    %18 = arith.maximumf %14, %17 : vector<40x64xf32>
    %c3 = arith.constant 3 : index
    %c0_20 = arith.constant 0 : index
    %c0_21 = arith.constant 0 : index
    %19 = vector.load %arg5[%c3, %c0_20, %c0_21] : memref<4x256x64xf32, #tpu.memory_space<vmem>>, vector<1x256x64xf32>
    %20 = vector.shape_cast %19 : vector<1x256x64xf32> to vector<256x64xf32>
    %cst_22 = arith.constant dense<0.000000e+00> : vector<40x64xf32>
    %21 = tpu.matmul %7, %20, %cst_22 {dimension_numbers = #tpu.dot_dimension_numbers<[1], [0], [0], [1], [0, 0, 1, 1], [], []>} : vector<40x256xf32>, vector<256x64xf32>, vector<40x64xf32> -> vector<40x64xf32>
    %22 = arith.maximumf %18, %21 : vector<40x64xf32>
    %23 = vector.extract_strided_slice %22 {offsets = [0, 0], sizes = [8, 64], strides = [1, 1]} : vector<40x64xf32> to vector<8x64xf32>
    %24 = vector.extract_strided_slice %22 {offsets = [8, 0], sizes = [32, 64], strides = [1, 1]} : vector<40x64xf32> to vector<32x64xf32>
    %cst_23 = arith.constant dense<0.000000e+00> : vector<256x64xf32>
    %25 = tpu.matmul %5, %23, %cst_23 {dimension_numbers = #tpu.dot_dimension_numbers<[1], [0], [0], [1], [0, 0, 1, 1], [], []>} : vector<256x8xf32>, vector<8x64xf32>, vector<256x64xf32> -> vector<256x64xf32>
    %cst_24 = arith.constant dense<0xFF800000> : vector<256xf32>
    %26 = vector.multi_reduction <maximumf>, %25, %cst_24 [1] : vector<256x64xf32> to vector<256xf32>
    %27 = vector.shape_cast %26 : vector<256xf32> to vector<256x1xf32>
    %28 = vector.broadcast %27 : vector<256x1xf32> to vector<256x64xf32>
    %29 = arith.subf %25, %28 : vector<256x64xf32>
    %30 = math.exp %29 : vector<256x64xf32>
    %cst_25 = arith.constant dense<0.000000e+00> : vector<256xf32>
    %31 = vector.multi_reduction <add>, %30, %cst_25 [1] : vector<256x64xf32> to vector<256xf32>
    %32 = vector.shape_cast %31 : vector<256xf32> to vector<256x1xf32>
    %33 = tpu.reciprocal %32 : vector<256x1xf32> -> vector<256x1xf32>
    %34 = vector.broadcast %33 : vector<256x1xf32> to vector<256x64xf32>
    %35 = arith.mulf %30, %34 : vector<256x64xf32>
    %cst_26 = arith.constant dense<0.000000e+00> : vector<32x256xf32>
    %36 = tpu.matmul %24, %35, %cst_26 {dimension_numbers = #tpu.dot_dimension_numbers<[1], [1], [0], [0], [0, 0, 1, 0], [], []>} : vector<32x64xf32>, vector<256x64xf32>, vector<32x256xf32> -> vector<32x256xf32>
    %c0_27 = arith.constant 0 : index
    %c0_28 = arith.constant 0 : index
    %37 = vector.load %arg6[%c0_27, %c0_28] : memref<64x32xf32, #tpu.memory_space<vmem>>, vector<64x32xf32>
    %cst_29 = arith.constant dense<0.000000e+00> : vector<64x256xf32>
    %38 = tpu.matmul %37, %36, %cst_29 {dimension_numbers = #tpu.dot_dimension_numbers<[1], [0], [0], [1], [0, 0, 1, 1], [], []>} : vector<64x32xf32>, vector<32x256xf32>, vector<64x256xf32> -> vector<64x256xf32>
    %39 = arith.addf %38, %1 : vector<64x256xf32>
    %c0_30 = arith.constant 0 : index
    %c0_31 = arith.constant 0 : index
    %c0_32 = arith.constant 0 : index
    %40 = vector.load %arg7[%c0_30, %c0_31, %c0_32] : memref<1x64x256xf32, #tpu.memory_space<vmem>>, vector<1x64x256xf32>
    %41 = vector.shape_cast %40 : vector<1x64x256xf32> to vector<64x256xf32>
    %42 = vector.shape_cast %39 : vector<64x256xf32> to vector<1x64x256xf32>
    tpu.vector_store %arg7[%c0_30, %c0_31, %c0_32], %42 {strides = array<i32>} : memref<1x64x256xf32, #tpu.memory_space<vmem>>, vector<1x64x256xf32>,
    return
  }
  func.func @transform_0(%arg0: i32) -> (i32, i32, i32) {
    %c0_i32 = arith.constant 0 : i32
    %c0_i32_0 = arith.constant 0 : i32
    %c0_i32_1 = arith.constant 0 : i32
    return %arg0, %c0_i32, %c0_i32_0 : i32, i32, i32
  }
  func.func @transform_1(%arg0: i32) -> (i32, i32, i32) {
    %c0_i32 = arith.constant 0 : i32
    %c0_i32_0 = arith.constant 0 : i32
    %c0_i32_1 = arith.constant 0 : i32
    return %arg0, %c0_i32, %c0_i32_0 : i32, i32, i32
  }
  func.func @transform_2(%arg0: i32) -> (i32, i32) {
    %c0_i32 = arith.constant 0 : i32
    %c0_i32_0 = arith.constant 0 : i32
    %c0_i32_1 = arith.constant 0 : i32
    return %c0_i32, %c0_i32_0 : i32, i32
  }
  func.func @transform_3(%arg0: i32) -> (i32, i32) {
    %c0_i32 = arith.constant 0 : i32
    %c0_i32_0 = arith.constant 0 : i32
    %c0_i32_1 = arith.constant 0 : i32
    return %c0_i32, %c0_i32_0 : i32, i32
  }
  func.func @transform_4(%arg0: i32) -> (i32, i32, i32) {
    %c0_i32 = arith.constant 0 : i32
    %c0_i32_0 = arith.constant 0 : i32
    %c0_i32_1 = arith.constant 0 : i32
    %c0_i32_2 = arith.constant 0 : i32
    return %c0_i32, %c0_i32_0, %c0_i32_1 : i32, i32, i32
  }
  func.func @transform_5(%arg0: i32) -> (i32, i32) {
    %c0_i32 = arith.constant 0 : i32
    %c0_i32_0 = arith.constant 0 : i32
    %c0_i32_1 = arith.constant 0 : i32
    return %c0_i32, %c0_i32_0 : i32, i32
  }
  func.func @transform_6(%arg0: i32) -> (i32, i32, i32) {
    %c0_i32 = arith.constant 0 : i32
    %c0_i32_0 = arith.constant 0 : i32
    %c0_i32_1 = arith.constant 0 : i32
    return %arg0, %c0_i32, %c0_i32_0 : i32, i32, i32
  }
}

</mosaic_0001>

<llo_original>
// kernel: tpu_custom_call.1
$region0: #{tpu_custom_call.1}
  #allocation0 [shape = 'u32[]', space=smem, size = 0x4, offset = 0x4, fixed_abs, tag = 'smem constant byte address 0x4 - core index']
  #allocation1 [shape = 'u32[144,128]{1,0:T(1,128)}', space=vmem, size = 0x12000, scoped, tag = 'internal scratch']
  %s0 = inlined_call_operand.vmem [shape: f32[2,64,256], index: 0, kind: input, shape index: {}]
  %s1 = inlined_call_operand.vmem [shape: f32[2,256,64], index: 1, kind: input, shape index: {}]
  %s2 = inlined_call_operand.vmem [shape: f32[64,8], index: 2, kind: input, shape index: {}]
  %s3 = inlined_call_operand.vmem [shape: f32[40,64], index: 3, kind: input, shape index: {}]
  %s4 = inlined_call_operand.vmem [shape: f32[4,256,64], index: 4, kind: input, shape index: {}]
  %s5 = inlined_call_operand.vmem [shape: f32[64,32], index: 5, kind: input, shape index: {}]
  %s6 = inlined_call_operand.hbm [shape: f32[2,64,256], index: 6, kind: output, shape index: {}]
  %s7 = sld [smem:[#allocation0]]
  $region57: #{tpu_custom_call.1} parent=0
    _
  %s9 = ssub.s32 1, %s7
  %s10 = scalar_select 0, %s9, %s7
  $region1: #{tpu_custom_call.1} parent=0
    #allocation2 [shape = 'u8[131072]{0}', space=vmem, size = 0x20000, scoped, tag = 'output window, operand 0']
    #allocation3 [shape = 's32[2]{0}', space=sflag, size = 0x8, scoped, tag = 'scoped memory for tpu_custom_call.1']
    %11 = vsyncpa [#allocation3], 0
    %s12 = scalar_lea.sflag [#allocation3], 1
    %13 = vsyncpa %s12, 0
    loop: start=0, step=1, limit=4
    $region2: #{tpu_custom_call.1} parent=1 // loop_pre_header
      _
    $region3: #{tpu_custom_call.1} parent=1 // loop_header
      %s15 = sphi 0, %s19
      %p16 = scmp.ge.s32.totalorder %s15, 4
      %s25 = sphi 0, %s27
      %s28 = sphi 0, %s25
      %s29 = sphi 0, %s28
      %s45 = sphi 0, %s29
      %s51 = sphi 0, %s53
      %s54 = sphi 0, %s51
      %s55 = sphi 0, %s54
      %s71 = sphi 0, %s55
      %s75 = sphi 0, %s75
      %s77 = sphi 0, %s75
      %s78 = sphi 0, %s77
      %s92 = sphi 0, %s78
      %s96 = sphi 0, %s96
      %s98 = sphi 0, %s96
      %s99 = sphi 0, %s98
      %s113 = sphi 0, %s99
      %s117 = sphi 0, %s117
      %s119 = sphi 0, %s117
      %s120 = sphi 0, %s119
      %s134 = sphi 0, %s120
      %s138 = sphi 0, %s138
      %s140 = sphi 0, %s138
      %s141 = sphi 0, %s140
      %s155 = sphi 0, %s141
      %s161 = sphi 0, %s163
      %s164 = sphi 0, %s161
      %s165 = sphi 0, %s164
      %s181 = sphi 0, %s165
    $region4: #{tpu_custom_call.1} parent=1 // loop_header_branch
      %18 = sbr.rel (%p16) target = $region8
    $region5: #{tpu_custom_call.1} parent=1 // loop_body
      %s20 = ssub.s32 %s15, 1
      %s21 = ssub.s32 %s15, 2
      %s22 = sadd.s32 %s15, 1
      %s23 = ssub.s32 %s15, %s22
      %p24 = scmp.eq.s32.totalorder %s23, 0
      %s26 = sadd.s32 %s25, 1
      %s27 = scalar_select %p24, %s25, %s26
      %p30 = pneg %p24
      %p31 = scmp.eq.s32.totalorder %s15, 1
      %p32 = por %p30, %p31
      %p33 = scmp.ne.s32.totalorder %s25, %s28
      %p34 = scmp.eq.s32.totalorder %s15, 0
      %p35 = por %p33, %p34
      %p36 = scmp.ne.s32.totalorder %s25, %s28
      %p37 = scmp.eq.s32.totalorder %s20, 1
      %p38 = por %p36, %p37
      %p39 = scmp.ne.s32.totalorder %s28, %s29
      %p40 = scmp.eq.s32.totalorder %s20, 0
      %p41 = por %p39, %p40
      %p42 = scmp.ne.s32.totalorder %s28, %s29
      %p43 = scmp.eq.s32.totalorder %s21, 1
      %p44 = por %p42, %p43
      %p46 = scmp.ne.s32.totalorder %s29, %s45
      %p47 = scmp.eq.s32.totalorder %s21, 0
      %p48 = por %p46, %p47
      %s49 = ssub.s32 %s15, %s22
      %p50 = scmp.eq.s32.totalorder %s49, 0
      %s52 = sadd.s32 %s51, 1
      %s53 = scalar_select %p50, %s51, %s52
      %p56 = pneg %p50
      %p57 = scmp.eq.s32.totalorder %s15, 1
      %p58 = por %p56, %p57
      %p59 = scmp.ne.s32.totalorder %s51, %s54
      %p60 = scmp.eq.s32.totalorder %s15, 0
      %p61 = por %p59, %p60
      %p62 = scmp.ne.s32.totalorder %s51, %s54
      %p63 = scmp.eq.s32.totalorder %s20, 1
      %p64 = por %p62, %p63
      %p65 = scmp.ne.s32.totalorder %s54, %s55
      %p66 = scmp.eq.s32.totalorder %s20, 0
      %p67 = por %p65, %p66
      %p68 = scmp.ne.s32.totalorder %s54, %s55
      %p69 = scmp.eq.s32.totalorder %s21, 1
      %p70 = por %p68, %p69
      %p72 = scmp.ne.s32.totalorder %s55, %s71
      %p73 = scmp.eq.s32.totalorder %s21, 0
      %p74 = por %p72, %p73
      %s76 = sadd.s32 %s75, 1
      %p79 = scmp.eq.s32.totalorder %s15, 1
      %p80 = scmp.ne.s32.totalorder %s75, %s77
      %p81 = scmp.eq.s32.totalorder %s15, 0
      %p82 = por %p80, %p81
      %p83 = scmp.ne.s32.totalorder %s75, %s77
      %p84 = scmp.eq.s32.totalorder %s20, 1
      %p85 = por %p83, %p84
      %p86 = scmp.ne.s32.totalorder %s77, %s78
      %p87 = scmp.eq.s32.totalorder %s20, 0
      %p88 = por %p86, %p87
      %p89 = scmp.ne.s32.totalorder %s77, %s78
      %p90 = scmp.eq.s32.totalorder %s21, 1
      %p91 = por %p89, %p90
      %p93 = scmp.ne.s32.totalorder %s78, %s92
      %p94 = scmp.eq.s32.totalorder %s21, 0
      %p95 = por %p93, %p94
      %s97 = sadd.s32 %s96, 1
      %p100 = scmp.eq.s32.totalorder %s15, 1
      %p101 = scmp.ne.s32.totalorder %s96, %s98
      %p102 = scmp.eq.s32.totalorder %s15, 0
      %p103 = por %p101, %p102
      %p104 = scmp.ne.s32.totalorder %s96, %s98
      %p105 = scmp.eq.s32.totalorder %s20, 1
      %p106 = por %p104, %p105
      %p107 = scmp.ne.s32.totalorder %s98, %s99
      %p108 = scmp.eq.s32.totalorder %s20, 0
      %p109 = por %p107, %p108
      %p110 = scmp.ne.s32.totalorder %s98, %s99
      %p111 = scmp.eq.s32.totalorder %s21, 1
      %p112 = por %p110, %p111
      %p114 = scmp.ne.s32.totalorder %s99, %s113
      %p115 = scmp.eq.s32.totalorder %s21, 0
      %p116 = por %p114, %p115
      %s118 = sadd.s32 %s117, 1
      %p121 = scmp.eq.s32.totalorder %s15, 1
      %p122 = scmp.ne.s32.totalorder %s117, %s119
      %p123 = scmp.eq.s32.totalorder %s15, 0
      %p124 = por %p122, %p123
      %p125 = scmp.ne.s32.totalorder %s117, %s119
      %p126 = scmp.eq.s32.totalorder %s20, 1
      %p127 = por %p125, %p126
      %p128 = scmp.ne.s32.totalorder %s119, %s120
      %p129 = scmp.eq.s32.totalorder %s20, 0
      %p130 = por %p128, %p129
      %p131 = scmp.ne.s32.totalorder %s119, %s120
      %p132 = scmp.eq.s32.totalorder %s21, 1
      %p133 = por %p131, %p132
      %p135 = scmp.ne.s32.totalorder %s120, %s134
      %p136 = scmp.eq.s32.totalorder %s21, 0
      %p137 = por %p135, %p136
      %s139 = sadd.s32 %s138, 1
      %p142 = scmp.eq.s32.totalorder %s15, 1
      %p143 = scmp.ne.s32.totalorder %s138, %s140
      %p144 = scmp.eq.s32.totalorder %s15, 0
      %p145 = por %p143, %p144
      %p146 = scmp.ne.s32.totalorder %s138, %s140
      %p147 = scmp.eq.s32.totalorder %s20, 1
      %p148 = por %p146, %p147
      %p149 = scmp.ne.s32.totalorder %s140, %s141
      %p150 = scmp.eq.s32.totalorder %s20, 0
      %p151 = por %p149, %p150
      %p152 = scmp.ne.s32.totalorder %s140, %s141
      %p153 = scmp.eq.s32.totalorder %s21, 1
      %p154 = por %p152, %p153
      %p156 = scmp.ne.s32.totalorder %s141, %s155
      %p157 = scmp.eq.s32.totalorder %s21, 0
      %p158 = por %p156, %p157
      %s159 = ssub.s32 %s15, %s22
      %p160 = scmp.eq.s32.totalorder %s159, 0
      %s162 = sadd.s32 %s161, 1
      %s163 = scalar_select %p160, %s161, %s162
      %p166 = pneg %p160
      %p167 = scmp.eq.s32.totalorder %s15, 1
      %p168 = por %p166, %p167
      %p169 = scmp.ne.s32.totalorder %s161, %s164
      %p170 = scmp.eq.s32.totalorder %s15, 0
      %p171 = por %p169, %p170
      %p172 = scmp.ne.s32.totalorder %s161, %s164
      %p173 = scmp.eq.s32.totalorder %s20, 1
      %p174 = por %p172, %p173
      %p175 = scmp.ne.s32.totalorder %s164, %s165
      %p176 = scmp.eq.s32.totalorder %s20, 0
      %p177 = por %p175, %p176
      %p178 = scmp.ne.s32.totalorder %s164, %s165
      %p179 = scmp.eq.s32.totalorder %s21, 1
      %p180 = por %p178, %p179
      %p182 = scmp.ne.s32.totalorder %s165, %s181
      %p183 = scmp.eq.s32.totalorder %s21, 0
      %p184 = por %p182, %p183
      %p185 = scmp.le.s32.totalorder 1, %s15
      %p186 = scmp.lt.s32.totalorder %s15, 3
      %p187 = pnand %p185, %p186
      %p188 = pneg %p187
      // Predicated region
      $region9: #{tpu_custom_call.1} parent=5 // pred_check
        _
      $region10: #{tpu_custom_call.1} parent=5 // pred_check_branch
        %190 = sbr.rel (%p187) target = $region12
      $region11: #{tpu_custom_call.1} parent=5 // pred_region
        %s191 = ssub.s32 %s15, 1
        // Predicated region
        $region13: #{tpu_custom_call.1} parent=11 // pred_check
          %p192 = pneg %p88
        $region14: #{tpu_custom_call.1} parent=11 // pred_check_branch
          %194 = sbr.rel (%p192) target = $region16
        $region15: #{tpu_custom_call.1} parent=11 // pred_region
          _
        $region16: #{tpu_custom_call.1} parent=11 // pred_fallthru
          _
        // Predicated region
        $region17: #{tpu_custom_call.1} parent=11 // pred_check
          %p195 = pneg %p109
        $region18: #{tpu_custom_call.1} parent=11 // pred_check_branch
          %197 = sbr.rel (%p195) target = $region20
        $region19: #{tpu_custom_call.1} parent=11 // pred_region
          _
        $region20: #{tpu_custom_call.1} parent=11 // pred_fallthru
          _
        // Predicated region
        $region21: #{tpu_custom_call.1} parent=11 // pred_check
          %p198 = pneg %p130
        $region22: #{tpu_custom_call.1} parent=11 // pred_check_branch
          %200 = sbr.rel (%p198) target = $region24
        $region23: #{tpu_custom_call.1} parent=11 // pred_region
          _
        $region24: #{tpu_custom_call.1} parent=11 // pred_fallthru
          _
        // Predicated region
        $region25: #{tpu_custom_call.1} parent=11 // pred_check
          %p201 = pneg %p151
        $region26: #{tpu_custom_call.1} parent=11 // pred_check_branch
          %203 = sbr.rel (%p201) target = $region28
        $region27: #{tpu_custom_call.1} parent=11 // pred_region
          _
        $region28: #{tpu_custom_call.1} parent=11 // pred_fallthru
          _
      $region12: #{tpu_custom_call.1} parent=5 // pred_fallthru
        _
      %p204 = scmp.lt.s32.totalorder %s15, 2
      // Predicated region
      $region29: #{tpu_custom_call.1} parent=5 // pred_check
        %p205 = pneg %p204
      $region30: #{tpu_custom_call.1} parent=5 // pred_check_branch
        %207 = sbr.rel (%p205) target = $region32
      $region31: #{tpu_custom_call.1} parent=5 // pred_region
        // Predicated region
        $region33: #{tpu_custom_call.1} parent=31 // pred_check
          %p208 = pneg %p35
        $region34: #{tpu_custom_call.1} parent=31 // pred_check_branch
          %210 = sbr.rel (%p208) target = $region36
        $region35: #{tpu_custom_call.1} parent=31 // pred_region
          %p211 = scmp.lt.s32.totalorder %s15, 1
          %s212 = scalar_select %p211, %s15, 1
          %s213 = smul.addr %s212, 16
          %s214 = smul.addr %s213, 8
          %s215 = scalar_lea.vmem %s0, %s214
        $region36: #{tpu_custom_call.1} parent=31 // pred_fallthru
          _
        // Predicated region
        $region37: #{tpu_custom_call.1} parent=31 // pred_check
          %p216 = pneg %p61
        $region38: #{tpu_custom_call.1} parent=31 // pred_check_branch
          %218 = sbr.rel (%p216) target = $region40
        $region39: #{tpu_custom_call.1} parent=31 // pred_region
          %p219 = scmp.lt.s32.totalorder %s15, 1
          %s220 = scalar_select %p219, %s15, 1
          %s221 = smul.addr %s220, 32
          %s222 = smul.addr %s221, 8
          %s223 = scalar_lea.vmem %s1, %s222
        $region40: #{tpu_custom_call.1} parent=31 // pred_fallthru
          _
      $region32: #{tpu_custom_call.1} parent=5 // pred_fallthru
        _
      %p224 = scmp.le.s32.totalorder 1, %s15
      %p225 = scmp.lt.s32.totalorder %s15, 3
      %p226 = pnand %p224, %p225
      %p227 = pneg %p226
      // Predicated region
      $region41: #{tpu_custom_call.1} parent=5 // pred_check
        _
      $region42: #{tpu_custom_call.1} parent=5 // pred_check_branch
        %229 = sbr.rel (%p226) target = $region44
      $region43: #{tpu_custom_call.1} parent=5 // pred_region
        %s230 = ssub.s32 %s15, 1
        %p231 = scmp.lt.s32.totalorder %s20, 1
        %s232 = scalar_select %p231, %s20, 1
        %s233 = smul.addr %s232, 16
        %s234 = smul.addr %s233, 8
        %s235 = scalar_lea.vmem %s0, %s234
        %p236 = pneg %p41
        %p237 = pneg %p38
        %p238 = scmp.lt.s32.totalorder %s20, 1
        %s239 = scalar_select %p238, %s20, 1
        %s240 = smul.addr %s239, 32
        %s241 = smul.addr %s240, 8
        %s242 = scalar_lea.vmem %s1, %s241
        %p243 = pneg %p67
        %p244 = pneg %p64
        %p245 = pneg %p88
        %p246 = pneg %p85
        %p247 = pneg %p109
        %p248 = pneg %p106
        %p249 = pneg %p130
        %p250 = pneg %p127
        %p251 = pneg %p151
        %p252 = pneg %p148
        %p253 = pneg %p177
        %p254 = pneg %p174
        %s255 = sand.u32 %s164, 1
        %s256 = scalar_lea.sflag [#allocation3], %s255
        %s257 = sand.u32 %s164, 1
        %s258 = smul.addr %s257, 128
        %s259 = scalar_lea.vmem [#allocation2], %s258
        %p260 = scmp.lt.s32.totalorder %s20, 1
        %s261 = scalar_select %p260, %s20, 1
        %s262 = smul.addr %s261, 16
        %s263 = smul.addr %s262, 8
        %s264 = scalar_lea.vmem %s0, %s263
        %p265 = scmp.lt.s32.totalorder %s20, 1
        %s266 = scalar_select %p265, %s20, 1
        %s267 = smul.addr %s266, 32
        %s268 = smul.addr %s267, 8
        %s269 = scalar_lea.vmem %s1, %s268
        %v270 = vld [vmem:[%s264] sm:$0xff]
        %v271 = vld [vmem:[%s264 + $0x8] sm:$0xff]
        %v272 = vld [vmem:[%s264 + $0x10] sm:$0xff]
        %v273 = vld [vmem:[%s264 + $0x18] sm:$0xff]
        %v274 = vld [vmem:[%s264 + $0x20] sm:$0xff]
        %v275 = vld [vmem:[%s264 + $0x28] sm:$0xff]
        %v276 = vld [vmem:[%s264 + $0x30] sm:$0xff]
        %v277 = vld [vmem:[%s264 + $0x38] sm:$0xff]
        %v278 = vld [vmem:[%s264 + $0x40] sm:$0xff]
        %v279 = vld [vmem:[%s264 + $0x48] sm:$0xff]
        %v280 = vld [vmem:[%s264 + $0x50] sm:$0xff]
        %v281 = vld [vmem:[%s264 + $0x58] sm:$0xff]
        %v282 = vld [vmem:[%s264 + $0x60] sm:$0xff]
        %v283 = vld [vmem:[%s264 + $0x68] sm:$0xff]
        %v284 = vld [vmem:[%s264 + $0x70] sm:$0xff]
        %v285 = vld [vmem:[%s264 + $0x78] sm:$0xff]
        %v286 = vld [vmem:[%s269] sm:$0xff]
        %v287 = vld [vmem:[%s269 + $0x8] sm:$0xff]
        %v288 = vld [vmem:[%s269 + $0x10] sm:$0xff]
        %v289 = vld [vmem:[%s269 + $0x18] sm:$0xff]
        %v290 = vld [vmem:[%s269 + $0x20] sm:$0xff]
        %v291 = vld [vmem:[%s269 + $0x28] sm:$0xff]
        %v292 = vld [vmem:[%s269 + $0x30] sm:$0xff]
        %v293 = vld [vmem:[%s269 + $0x38] sm:$0xff]
        %v294 = vld [vmem:[%s269 + $0x40] sm:$0xff]
        %v295 = vld [vmem:[%s269 + $0x48] sm:$0xff]
        %v296 = vld [vmem:[%s269 + $0x50] sm:$0xff]
        %v297 = vld [vmem:[%s269 + $0x58] sm:$0xff]
        %v298 = vld [vmem:[%s269 + $0x60] sm:$0xff]
        %v299 = vld [vmem:[%s269 + $0x68] sm:$0xff]
        %v300 = vld [vmem:[%s269 + $0x70] sm:$0xff]
        %v301 = vld [vmem:[%s269 + $0x78] sm:$0xff]
        %v302 = vld [vmem:[%s269 + $0x80] sm:$0xff]
        %v303 = vld [vmem:[%s269 + $0x88] sm:$0xff]
        %v304 = vld [vmem:[%s269 + $0x90] sm:$0xff]
        %v305 = vld [vmem:[%s269 + $0x98] sm:$0xff]
        %v306 = vld [vmem:[%s269 + $0xa0] sm:$0xff]
        %v307 = vld [vmem:[%s269 + $0xa8] sm:$0xff]
        %v308 = vld [vmem:[%s269 + $0xb0] sm:$0xff]
        %v309 = vld [vmem:[%s269 + $0xb8] sm:$0xff]
        %v310 = vld [vmem:[%s269 + $0xc0] sm:$0xff]
        %v311 = vld [vmem:[%s269 + $0xc8] sm:$0xff]
        %v312 = vld [vmem:[%s269 + $0xd0] sm:$0xff]
        %v313 = vld [vmem:[%s269 + $0xd8] sm:$0xff]
        %v314 = vld [vmem:[%s269 + $0xe0] sm:$0xff]
        %v315 = vld [vmem:[%s269 + $0xe8] sm:$0xff]
        %v316 = vld [vmem:[%s269 + $0xf0] sm:$0xff]
        %v317 = vld [vmem:[%s269 + $0xf8] sm:$0xff]
        %v318 = vld [vmem:[%s2] sm:$0xff]
        %v319 = vld [vmem:[%s2 + $0x8] sm:$0xff]
        %v320 = vld [vmem:[%s2 + $0x10] sm:$0xff]
        %v321 = vld [vmem:[%s2 + $0x18] sm:$0xff]
        %v322 = vld [vmem:[%s2 + $0x20] sm:$0xff]
        %v323 = vld [vmem:[%s2 + $0x28] sm:$0xff]
        %v324 = vld [vmem:[%s2 + $0x30] sm:$0xff]
        %v325 = vld [vmem:[%s2 + $0x38] sm:$0xff]
        %vm326 = vcmask 523264
        %v328 = vsel %vm326, %v286, 0
        %v331 = vsel %vm326, %v287, 0
        %v334 = vsel %vm326, %v288, 0
        %v337 = vsel %vm326, %v289, 0
        %v340 = vsel %vm326, %v290, 0
        %v343 = vsel %vm326, %v291, 0
        %v346 = vsel %vm326, %v292, 0
        %v349 = vsel %vm326, %v293, 0
        %v352 = vsel %vm326, %v294, 0
        %v355 = vsel %vm326, %v295, 0
        %v358 = vsel %vm326, %v296, 0
        %v361 = vsel %vm326, %v297, 0
        %v364 = vsel %vm326, %v298, 0
        %v367 = vsel %vm326, %v299, 0
        %v370 = vsel %vm326, %v300, 0
        %v373 = vsel %vm326, %v301, 0
        %v376 = vsel %vm326, %v302, 0
        %v379 = vsel %vm326, %v303, 0
        %v382 = vsel %vm326, %v304, 0
        %v385 = vsel %vm326, %v305, 0
        %v388 = vsel %vm326, %v306, 0
        %v391 = vsel %vm326, %v307, 0
        %v394 = vsel %vm326, %v308, 0
        %v397 = vsel %vm326, %v309, 0
        %v400 = vsel %vm326, %v310, 0
        %v403 = vsel %vm326, %v311, 0
        %v406 = vsel %vm326, %v312, 0
        %v409 = vsel %vm326, %v313, 0
        %v412 = vsel %vm326, %v314, 0
        %v415 = vsel %vm326, %v315, 0
        %v418 = vsel %vm326, %v316, 0
        %v421 = vsel %vm326, %v317, 0
        %423 = vmatprep.subr.mxu0 0.0
        %424 = vmatpush1.msra.mxu0 %v318
        %425 = vmatprep.subr.mxu0 0.0
        %426 = vmatpush1.msra.mxu0 %v319
        %427 = vmatprep.subr.mxu0 0.0
        %428 = vmatpush1.msra.mxu0 %v320
        %429 = vmatprep.subr.mxu0 0.0
        %430 = vmatpush1.msra.mxu0 %v321
        %431 = vmatprep.subr.mxu0 0.0
        %432 = vmatpush1.msra.mxu0 %v322
        %433 = vmatprep.subr.mxu0 0.0
        %434 = vmatpush1.msra.mxu0 %v323
        %435 = vmatprep.subr.mxu0 0.0
        %436 = vmatpush1.msra.mxu0 %v324
        %437 = vmatprep.subr.mxu0 0.0
        %438 = vmatpush1.msra.mxu0 %v325
        %439 = vmatprep.subr.mxu0 0.0
        %440 = vmatpush1.msra.mxu0 0.0
        %441 = vmatprep.subr.mxu0 0.0
        %442 = vmatpush1.msra.mxu0 0.0
        %443 = vmatprep.subr.mxu0 0.0
        %444 = vmatpush1.msra.mxu0 0.0
        %445 = vmatprep.subr.mxu0 0.0
        %446 = vmatpush1.msra.mxu0 0.0
        %447 = vmatprep.subr.mxu0 0.0
        %448 = vmatpush1.msra.mxu0 0.0
        %449 = vmatprep.subr.mxu0 0.0
        %450 = vmatpush1.msra.mxu0 0.0
        %451 = vmatprep.subr.mxu0 0.0
        %452 = vmatpush1.msra.mxu0 0.0
        %453 = vmatprep.subr.mxu0 0.0
        %454 = vmatpush1.msra.mxu0 0.0
        %455 = vmatprep.subr.mxu0 0.0
        %456 = vmatpush1.msra.mxu0 0.0
        %457 = vmatprep.subr.mxu0 0.0
        %458 = vmatpush1.msra.mxu0 0.0
        %459 = vmatprep.subr.mxu0 0.0
        %460 = vmatpush1.msra.mxu0 0.0
        %461 = vmatprep.subr.mxu0 0.0
        %462 = vmatpush1.msra.mxu0 0.0
        %463 = vmatprep.subr.mxu0 0.0
        %464 = vmatpush1.msra.mxu0 0.0
        %465 = vmatprep.subr.mxu0 0.0
        %466 = vmatpush1.msra.mxu0 0.0
        %467 = vmatprep.subr.mxu0 0.0
        %468 = vmatpush1.msra.mxu0 0.0
        %469 = vmatprep.subr.mxu0 0.0
        %470 = vmatpush1.msra.mxu0 0.0
        %471 = vmatprep.subr.mxu0 0.0
        %472 = vmatpush1.msra.mxu0 0.0
        %473 = vmatprep.subr.mxu0 0.0
        %474 = vmatpush1.msra.mxu0 0.0
        %475 = vmatprep.subr.mxu0 0.0
        %476 = vmatpush1.msra.mxu0 0.0
        %477 = vmatprep.subr.mxu0 0.0
        %478 = vmatpush1.msra.mxu0 0.0
        %479 = vmatprep.subr.mxu0 0.0
        %480 = vmatpush1.msra.mxu0 0.0
        %481 = vmatprep.subr.mxu0 0.0
        %482 = vmatpush1.msra.mxu0 0.0
        %483 = vmatprep.subr.mxu0 0.0
        %484 = vmatpush1.msra.mxu0 0.0
        %485 = vmatprep.subr.mxu0 0.0
        %486 = vmatpush1.msra.mxu0 0.0
        %487 = vmatprep.mubr.f32.mxu0 0.0
        %488 = vmatmul.mubr.f32.gmra.mrb[0].mxu0 %v328
        %v489 = vpop.f32.mrb[0].mxu0
        %v490 = vadd.f32 0.0, %v489
        %v491 = vpop.f32.mrb[0].mxu0
        %492 = vmatprep.mubr.f32.mxu0 0.0
        %493 = vmatmul.mubr.f32.gmra.mrb[0].mxu0 %v331
        %v494 = vpop.f32.mrb[0].mxu0
        %v495 = vadd.f32 0.0, %v494
        %v496 = vpop.f32.mrb[0].mxu0
        %497 = vmatprep.mubr.f32.mxu0 0.0
        %498 = vmatmul.mubr.f32.gmra.mrb[0].mxu0 %v334
        %v499 = vpop.f32.mrb[0].mxu0
        %v500 = vadd.f32 0.0, %v499
        %v501 = vpop.f32.mrb[0].mxu0
        %502 = vmatprep.mubr.f32.mxu0 0.0
        %503 = vmatmul.mubr.f32.gmra.mrb[0].mxu0 %v337
        %v504 = vpop.f32.mrb[0].mxu0
        %v505 = vadd.f32 0.0, %v504
        %v506 = vpop.f32.mrb[0].mxu0
        %507 = vmatprep.mubr.f32.mxu0 0.0
        %508 = vmatmul.mubr.f32.gmra.mrb[0].mxu0 %v340
        %v509 = vpop.f32.mrb[0].mxu0
        %v510 = vadd.f32 0.0, %v509
        %v511 = vpop.f32.mrb[0].mxu0
        %512 = vmatprep.mubr.f32.mxu0 0.0
        %513 = vmatmul.mubr.f32.gmra.mrb[0].mxu0 %v343
        %v514 = vpop.f32.mrb[0].mxu0
        %v515 = vadd.f32 0.0, %v514
        %v516 = vpop.f32.mrb[0].mxu0
        %517 = vmatprep.mubr.f32.mxu0 0.0
        %518 = vmatmul.mubr.f32.gmra.mrb[0].mxu0 %v346
        %v519 = vpop.f32.mrb[0].mxu0
        %v520 = vadd.f32 0.0, %v519
        %v521 = vpop.f32.mrb[0].mxu0
        %522 = vmatprep.mubr.f32.mxu0 0.0
        %523 = vmatmul.mubr.f32.gmra.mrb[0].mxu0 %v349
        %v524 = vpop.f32.mrb[0].mxu0
        %v525 = vadd.f32 0.0, %v524
        %v526 = vpop.f32.mrb[0].mxu0
        %527 = vmatprep.mubr.f32.mxu0 0.0
        %528 = vmatmul.mubr.f32.gmra.mrb[0].mxu0 %v352
        %v529 = vpop.f32.mrb[0].mxu0
        %v530 = vadd.f32 0.0, %v529
        %v531 = vpop.f32.mrb[0].mxu0
        %532 = vmatprep.mubr.f32.mxu0 0.0
        %533 = vmatmul.mubr.f32.gmra.mrb[0].mxu0 %v355
        %v534 = vpop.f32.mrb[0].mxu0
        %v535 = vadd.f32 0.0, %v534
        %v536 = vpop.f32.mrb[0].mxu0
        %537 = vmatprep.mubr.f32.mxu0 0.0
        %538 = vmatmul.mubr.f32.gmra.mrb[0].mxu0 %v358
        %v539 = vpop.f32.mrb[0].mxu0
        %v540 = vadd.f32 0.0, %v539
        %v541 = vpop.f32.mrb[0].mxu0
        %542 = vmatprep.mubr.f32.mxu0 0.0
        %543 = vmatmul.mubr.f32.gmra.mrb[0].mxu0 %v361
        %v544 = vpop.f32.mrb[0].mxu0
        %v545 = vadd.f32 0.0, %v544
        %v546 = vpop.f32.mrb[0].mxu0
        %547 = vmatprep.mubr.f32.mxu0 0.0
        %548 = vmatmul.mubr.f32.gmra.mrb[0].mxu0 %v364
        %v549 = vpop.f32.mrb[0].mxu0
        %v550 = vadd.f32 0.0, %v549
        %v551 = vpop.f32.mrb[0].mxu0
        %552 = vmatprep.mubr.f32.mxu0 0.0
        %553 = vmatmul.mubr.f32.gmra.mrb[0].mxu0 %v367
        %v554 = vpop.f32.mrb[0].mxu0
        %v555 = vadd.f32 0.0, %v554
        %v556 = vpop.f32.mrb[0].mxu0
        %557 = vmatprep.mubr.f32.mxu0 0.0
        %558 = vmatmul.mubr.f32.gmra.mrb[0].mxu0 %v370
        %v559 = vpop.f32.mrb[0].mxu0
        %v560 = vadd.f32 0.0, %v559
        %v561 = vpop.f32.mrb[0].mxu0
        %562 = vmatprep.mubr.f32.mxu0 0.0
        %563 = vmatmul.mubr.f32.gmra.mrb[0].mxu0 %v373
        %v564 = vpop.f32.mrb[0].mxu0
        %v565 = vadd.f32 0.0, %v564
        %v566 = vpop.f32.mrb[0].mxu0
        %567 = vmatprep.mubr.f32.mxu0 0.0
        %568 = vmatmul.mubr.f32.gmra.mrb[0].mxu0 %v376
        %v569 = vpop.f32.mrb[0].mxu0
        %v570 = vadd.f32 0.0, %v569
        %v571 = vpop.f32.mrb[0].mxu0
        %572 = vmatprep.mubr.f32.mxu0 0.0
        %573 = vmatmul.mubr.f32.gmra.mrb[0].mxu0 %v379
        %v574 = vpop.f32.mrb[0].mxu0
        %v575 = vadd.f32 0.0, %v574
        %v576 = vpop.f32.mrb[0].mxu0
        %577 = vmatprep.mubr.f32.mxu0 0.0
        %578 = vmatmul.mubr.f32.gmra.mrb[0].mxu0 %v382
        %v579 = vpop.f32.mrb[0].mxu0
        %v580 = vadd.f32 0.0, %v579
        %v581 = vpop.f32.mrb[0].mxu0
        %582 = vmatprep.mubr.f32.mxu0 0.0
        %583 = vmatmul.mubr.f32.gmra.mrb[0].mxu0 %v385
        %v584 = vpop.f32.mrb[0].mxu0
        %v585 = vadd.f32 0.0, %v584
        %v586 = vpop.f32.mrb[0].mxu0
        %587 = vmatprep.mubr.f32.mxu0 0.0
        %588 = vmatmul.mubr.f32.gmra.mrb[0].mxu0 %v388
        %v589 = vpop.f32.mrb[0].mxu0
        %v590 = vadd.f32 0.0, %v589
        %v591 = vpop.f32.mrb[0].mxu0
        %592 = vmatprep.mubr.f32.mxu0 0.0
        %593 = vmatmul.mubr.f32.gmra.mrb[0].mxu0 %v391
        %v594 = vpop.f32.mrb[0].mxu0
        %v595 = vadd.f32 0.0, %v594
        %v596 = vpop.f32.mrb[0].mxu0
        %597 = vmatprep.mubr.f32.mxu0 0.0
        %598 = vmatmul.mubr.f32.gmra.mrb[0].mxu0 %v394
        %v599 = vpop.f32.mrb[0].mxu0
        %v600 = vadd.f32 0.0, %v599
        %v601 = vpop.f32.mrb[0].mxu0
        %602 = vmatprep.mubr.f32.mxu0 0.0
        %603 = vmatmul.mubr.f32.gmra.mrb[0].mxu0 %v397
        %v604 = vpop.f32.mrb[0].mxu0
        %v605 = vadd.f32 0.0, %v604
        %v606 = vpop.f32.mrb[0].mxu0
        %607 = vmatprep.mubr.f32.mxu0 0.0
        %608 = vmatmul.mubr.f32.gmra.mrb[0].mxu0 %v400
        %v609 = vpop.f32.mrb[0].mxu0
        %v610 = vadd.f32 0.0, %v609
        %v611 = vpop.f32.mrb[0].mxu0
        %612 = vmatprep.mubr.f32.mxu0 0.0
        %613 = vmatmul.mubr.f32.gmra.mrb[0].mxu0 %v403
        %v614 = vpop.f32.mrb[0].mxu0
        %v615 = vadd.f32 0.0, %v614
        %v616 = vpop.f32.mrb[0].mxu0
        %617 = vmatprep.mubr.f32.mxu0 0.0
        %618 = vmatmul.mubr.f32.gmra.mrb[0].mxu0 %v406
        %v619 = vpop.f32.mrb[0].mxu0
        %v620 = vadd.f32 0.0, %v619
        %v621 = vpop.f32.mrb[0].mxu0
        %622 = vmatprep.mubr.f32.mxu0 0.0
        %623 = vmatmul.mubr.f32.gmra.mrb[0].mxu0 %v409
        %v624 = vpop.f32.mrb[0].mxu0
        %v625 = vadd.f32 0.0, %v624
        %v626 = vpop.f32.mrb[0].mxu0
        %627 = vmatprep.mubr.f32.mxu0 0.0
        %628 = vmatmul.mubr.f32.gmra.mrb[0].mxu0 %v412
        %v629 = vpop.f32.mrb[0].mxu0
        %v630 = vadd.f32 0.0, %v629
        %v631 = vpop.f32.mrb[0].mxu0
        %632 = vmatprep.mubr.f32.mxu0 0.0
        %633 = vmatmul.mubr.f32.gmra.mrb[0].mxu0 %v415
        %v634 = vpop.f32.mrb[0].mxu0
        %v635 = vadd.f32 0.0, %v634
        %v636 = vpop.f32.mrb[0].mxu0
        %637 = vmatprep.mubr.f32.mxu0 0.0
        %638 = vmatmul.mubr.f32.gmra.mrb[0].mxu0 %v418
        %v639 = vpop.f32.mrb[0].mxu0
        %v640 = vadd.f32 0.0, %v639
        %v641 = vpop.f32.mrb[0].mxu0
        %642 = vmatprep.mubr.f32.mxu0 0.0
        %643 = vmatmul.mubr.f32.gmra.mrb[0].mxu0 %v421
        %v644 = vpop.f32.mrb[0].mxu0
        %v645 = vadd.f32 0.0, %v644
        %v646 = vpop.f32.mrb[0].mxu0
        %647 = vdwg.mxu0
        %v648 = vld [vmem:[%s3] sm:$0xff]
        %v649 = vld [vmem:[%s3 + $0x8] sm:$0xff]
        %v650 = vld [vmem:[%s3 + $0x10] sm:$0xff]
        %v651 = vld [vmem:[%s3 + $0x18] sm:$0xff]
        %v652 = vld [vmem:[%s3 + $0x20] sm:$0xff]
        %v654 = vsel %vm326, %v648, 0
        %v657 = vsel %vm326, %v649, 0
        %v660 = vsel %vm326, %v650, 0
        %v663 = vsel %vm326, %v651, 0
        %v666 = vsel %vm326, %v652, 0
        %668 = vmatprep.subr.mxu0 %v271
        %669 = vmatpush1.msra.mxu0 %v270
        %670 = vmatprep.subr.mxu0 %v273
        %671 = vmatpush1.msra.mxu0 %v272
        %672 = vmatprep.subr.mxu0 %v275
        %673 = vmatpush1.msra.mxu0 %v274
        %674 = vmatprep.subr.mxu0 %v277
        %675 = vmatpush1.msra.mxu0 %v276
        %676 = vmatprep.subr.mxu0 %v279
        %677 = vmatpush1.msra.mxu0 %v278
        %678 = vmatprep.subr.mxu0 %v281
        %679 = vmatpush1.msra.mxu0 %v280
        %680 = vmatprep.subr.mxu0 %v283
        %681 = vmatpush1.msra.mxu0 %v282
        %682 = vmatprep.subr.mxu0 %v285
        %683 = vmatpush1.msra.mxu0 %v284
        %684 = vmatprep.subr.mxu0 0.0
        %685 = vmatpush1.msra.mxu0 0.0
        %686 = vmatprep.subr.mxu0 0.0
        %687 = vmatpush1.msra.mxu0 0.0
        %688 = vmatprep.subr.mxu0 0.0
        %689 = vmatpush1.msra.mxu0 0.0
        %690 = vmatprep.subr.mxu0 0.0
        %691 = vmatpush1.msra.mxu0 0.0
        %692 = vmatprep.subr.mxu0 0.0
        %693 = vmatpush1.msra.mxu0 0.0
        %694 = vmatprep.subr.mxu0 0.0
        %695 = vmatpush1.msra.mxu0 0.0
        %696 = vmatprep.subr.mxu0 0.0
        %697 = vmatpush1.msra.mxu0 0.0
        %698 = vmatprep.subr.mxu0 0.0
        %699 = vmatpush1.msra.mxu0 0.0
        %700 = vmatprep.subr.mxu0 0.0
        %701 = vmatpush1.msra.mxu0 0.0
        %702 = vmatprep.subr.mxu0 0.0
        %703 = vmatpush1.msra.mxu0 0.0
        %704 = vmatprep.subr.mxu0 0.0
        %705 = vmatpush1.msra.mxu0 0.0
        %706 = vmatprep.subr.mxu0 0.0
        %707 = vmatpush1.msra.mxu0 0.0
        %708 = vmatprep.subr.mxu0 0.0
        %709 = vmatpush1.msra.mxu0 0.0
        %710 = vmatprep.subr.mxu0 0.0
        %711 = vmatpush1.msra.mxu0 0.0
        %712 = vmatprep.subr.mxu0 0.0
        %713 = vmatpush1.msra.mxu0 0.0
        %714 = vmatprep.subr.mxu0 0.0
        %715 = vmatpush1.msra.mxu0 0.0
        %716 = vmatprep.subr.mxu0 0.0
        %717 = vmatpush1.msra.mxu0 0.0
        %718 = vmatprep.subr.mxu0 0.0
        %719 = vmatpush1.msra.mxu0 0.0
        %720 = vmatprep.subr.mxu0 0.0
        %721 = vmatpush1.msra.mxu0 0.0
        %722 = vmatprep.subr.mxu0 0.0
        %723 = vmatpush1.msra.mxu0 0.0
        %724 = vmatprep.subr.mxu0 0.0
        %725 = vmatpush1.msra.mxu0 0.0
        %726 = vmatprep.subr.mxu0 0.0
        %727 = vmatpush1.msra.mxu0 0.0
        %728 = vmatprep.subr.mxu0 0.0
        %729 = vmatpush1.msra.mxu0 0.0
        %730 = vmatprep.subr.mxu0 0.0
        %731 = vmatpush1.msra.mxu0 0.0
        %732 = vmatprep.mubr.f32.mxu0 0.0
        %733 = vmatmul.mubr.f32.gmra.mrb[0].mxu0 %v654
        %v734 = vpop.f32.mrb[0].mxu0
        %v735 = vadd.f32 0.0, %v734
        %v736 = vpop.f32.mrb[0].mxu0
        %v737 = vadd.f32 0.0, %v736
        %738 = vmatprep.mubr.f32.mxu0 0.0
        %739 = vmatmul.mubr.f32.gmra.mrb[0].mxu0 %v657
        %v740 = vpop.f32.mrb[0].mxu0
        %v741 = vadd.f32 0.0, %v740
        %v742 = vpop.f32.mrb[0].mxu0
        %v743 = vadd.f32 0.0, %v742
        %744 = vmatprep.mubr.f32.mxu0 0.0
        %745 = vmatmul.mubr.f32.gmra.mrb[0].mxu0 %v660
        %v746 = vpop.f32.mrb[0].mxu0
        %v747 = vadd.f32 0.0, %v746
        %v748 = vpop.f32.mrb[0].mxu0
        %v749 = vadd.f32 0.0, %v748
        %750 = vmatprep.mubr.f32.mxu0 0.0
        %751 = vmatmul.mubr.f32.gmra.mrb[0].mxu0 %v663
        %v752 = vpop.f32.mrb[0].mxu0
        %v753 = vadd.f32 0.0, %v752
        %v754 = vpop.f32.mrb[0].mxu0
        %v755 = vadd.f32 0.0, %v754
        %756 = vmatprep.mubr.f32.mxu0 0.0
        %757 = vmatmul.mubr.f32.gmra.mrb[0].mxu0 %v666
        %v758 = vpop.f32.mrb[0].mxu0
        %v759 = vadd.f32 0.0, %v758
        %v760 = vpop.f32.mrb[0].mxu0
        %v761 = vadd.f32 0.0, %v760
        %762 = vdwg.mxu0
        %v763 = vld [vmem:[%s4] sm:$0xff]
        %v764 = vld [vmem:[%s4 + $0x8] sm:$0xff]
        %v765 = vld [vmem:[%s4 + $0x10] sm:$0xff]
        %v766 = vld [vmem:[%s4 + $0x18] sm:$0xff]
        %v767 = vld [vmem:[%s4 + $0x20] sm:$0xff]
        %v768 = vld [vmem:[%s4 + $0x28] sm:$0xff]
        %v769 = vld [vmem:[%s4 + $0x30] sm:$0xff]
        %v770 = vld [vmem:[%s4 + $0x38] sm:$0xff]
        %v771 = vld [vmem:[%s4 + $0x40] sm:$0xff]
        %v772 = vld [vmem:[%s4 + $0x48] sm:$0xff]
        %v773 = vld [vmem:[%s4 + $0x50] sm:$0xff]
        %v774 = vld [vmem:[%s4 + $0x58] sm:$0xff]
        %v775 = vld [vmem:[%s4 + $0x60] sm:$0xff]
        %v776 = vld [vmem:[%s4 + $0x68] sm:$0xff]
        %v777 = vld [vmem:[%s4 + $0x70] sm:$0xff]
        %v778 = vld [vmem:[%s4 + $0x78] sm:$0xff]
        %v779 = vld [vmem:[%s4 + $0x80] sm:$0xff]
        %v780 = vld [vmem:[%s4 + $0x88] sm:$0xff]
        %v781 = vld [vmem:[%s4 + $0x90] sm:$0xff]
        %v782 = vld [vmem:[%s4 + $0x98] sm:$0xff]
        %v783 = vld [vmem:[%s4 + $0xa0] sm:$0xff]
        %v784 = vld [vmem:[%s4 + $0xa8] sm:$0xff]
        %v785 = vld [vmem:[%s4 + $0xb0] sm:$0xff]
        %v786 = vld [vmem:[%s4 + $0xb8] sm:$0xff]
        %v787 = vld [vmem:[%s4 + $0xc0] sm:$0xff]
        %v788 = vld [vmem:[%s4 + $0xc8] sm:$0xff]
        %v789 = vld [vmem:[%s4 + $0xd0] sm:$0xff]
        %v790 = vld [vmem:[%s4 + $0xd8] sm:$0xff]
        %v791 = vld [vmem:[%s4 + $0xe0] sm:$0xff]
        %v792 = vld [vmem:[%s4 + $0xe8] sm:$0xff]
        %v793 = vld [vmem:[%s4 + $0xf0] sm:$0xff]
        %v794 = vld [vmem:[%s4 + $0xf8] sm:$0xff]
        %795 = vmatprep.subr.mxu0 0.0
        %796 = vmatpush1.msra.mxu0 %v763
        %797 = vmatprep.subr.mxu0 0.0
        %798 = vmatpush1.msra.mxu0 %v764
        %799 = vmatprep.subr.mxu0 0.0
        %800 = vmatpush1.msra.mxu0 %v765
        %801 = vmatprep.subr.mxu0 0.0
        %802 = vmatpush1.msra.mxu0 %v766
        %803 = vmatprep.subr.mxu0 0.0
        %804 = vmatpush1.msra.mxu0 %v767
        %805 = vmatprep.subr.mxu0 0.0
        %806 = vmatpush1.msra.mxu0 %v768
        %807 = vmatprep.subr.mxu0 0.0
        %808 = vmatpush1.msra.mxu0 %v769
        %809 = vmatprep.subr.mxu0 0.0
        %810 = vmatpush1.msra.mxu0 %v770
        %811 = vmatprep.subr.mxu0 0.0
        %812 = vmatpush1.msra.mxu0 %v771
        %813 = vmatprep.subr.mxu0 0.0
        %814 = vmatpush1.msra.mxu0 %v772
        %815 = vmatprep.subr.mxu0 0.0
        %816 = vmatpush1.msra.mxu0 %v773
        %817 = vmatprep.subr.mxu0 0.0
        %818 = vmatpush1.msra.mxu0 %v774
        %819 = vmatprep.subr.mxu0 0.0
        %820 = vmatpush1.msra.mxu0 %v775
        %821 = vmatprep.subr.mxu0 0.0
        %822 = vmatpush1.msra.mxu0 %v776
        %823 = vmatprep.subr.mxu0 0.0
        %824 = vmatpush1.msra.mxu0 %v777
        %825 = vmatprep.subr.mxu0 0.0
        %826 = vmatpush1.msra.mxu0 %v778
        %827 = vmatprep.subr.mxu0 0.0
        %828 = vmatpush1.msra.mxu0 %v779
        %829 = vmatprep.subr.mxu0 0.0
        %830 = vmatpush1.msra.mxu0 %v780
        %831 = vmatprep.subr.mxu0 0.0
        %832 = vmatpush1.msra.mxu0 %v781
        %833 = vmatprep.subr.mxu0 0.0
        %834 = vmatpush1.msra.mxu0 %v782
        %835 = vmatprep.subr.mxu0 0.0
        %836 = vmatpush1.msra.mxu0 %v783
        %837 = vmatprep.subr.mxu0 0.0
        %838 = vmatpush1.msra.mxu0 %v784
        %839 = vmatprep.subr.mxu0 0.0
        %840 = vmatpush1.msra.mxu0 %v785
        %841 = vmatprep.subr.mxu0 0.0
        %842 = vmatpush1.msra.mxu0 %v786
        %843 = vmatprep.subr.mxu0 0.0
        %844 = vmatpush1.msra.mxu0 %v787
        %845 = vmatprep.subr.mxu0 0.0
        %846 = vmatpush1.msra.mxu0 %v788
        %847 = vmatprep.subr.mxu0 0.0
        %848 = vmatpush1.msra.mxu0 %v789
        %849 = vmatprep.subr.mxu0 0.0
        %850 = vmatpush1.msra.mxu0 %v790
        %851 = vmatprep.subr.mxu0 0.0
        %852 = vmatpush1.msra.mxu0 %v791
        %853 = vmatprep.subr.mxu0 0.0
        %854 = vmatpush1.msra.mxu0 %v792
        %855 = vmatprep.subr.mxu0 0.0
        %856 = vmatpush1.msra.mxu0 %v793
        %857 = vmatprep.subr.mxu0 0.0
        %858 = vmatpush1.msra.mxu0 %v794
        %859 = vmatprep.mubr.f32.mxu0 %v737
        %860 = vmatmul.mubr.f32.gmra.mrb[0].mxu0 %v735
        %v861 = vpop.f32.mrb[0].mxu0
        %v862 = vadd.f32 0.0, %v861
        %v863 = vpop.f32.mrb[0].mxu0
        %864 = vmatprep.mubr.f32.mxu0 %v743
        %865 = vmatmul.mubr.f32.gmra.mrb[0].mxu0 %v741
        %v866 = vpop.f32.mrb[0].mxu0
        %v867 = vadd.f32 0.0, %v866
        %v868 = vpop.f32.mrb[0].mxu0
        %869 = vmatprep.mubr.f32.mxu0 %v749
        %870 = vmatmul.mubr.f32.gmra.mrb[0].mxu0 %v747
        %v871 = vpop.f32.mrb[0].mxu0
        %v872 = vadd.f32 0.0, %v871
        %v873 = vpop.f32.mrb[0].mxu0
        %874 = vmatprep.mubr.f32.mxu0 %v755
        %875 = vmatmul.mubr.f32.gmra.mrb[0].mxu0 %v753
        %v876 = vpop.f32.mrb[0].mxu0
        %v877 = vadd.f32 0.0, %v876
        %v878 = vpop.f32.mrb[0].mxu0
        %879 = vmatprep.mubr.f32.mxu0 %v761
        %880 = vmatmul.mubr.f32.gmra.mrb[0].mxu0 %v759
        %v881 = vpop.f32.mrb[0].mxu0
        %v882 = vadd.f32 0.0, %v881
        %v883 = vpop.f32.mrb[0].mxu0
        %884 = vdwg.mxu0
        %s885 = scalar_lea.vmem %s4, 256
        %v886 = vld [vmem:[%s885] sm:$0xff]
        %v887 = vld [vmem:[%s885 + $0x8] sm:$0xff]
        %v888 = vld [vmem:[%s885 + $0x10] sm:$0xff]
        %v889 = vld [vmem:[%s885 + $0x18] sm:$0xff]
        %v890 = vld [vmem:[%s885 + $0x20] sm:$0xff]
        %v891 = vld [vmem:[%s885 + $0x28] sm:$0xff]
        %v892 = vld [vmem:[%s885 + $0x30] sm:$0xff]
        %v893 = vld [vmem:[%s885 + $0x38] sm:$0xff]
        %v894 = vld [vmem:[%s885 + $0x40] sm:$0xff]
        %v895 = vld [vmem:[%s885 + $0x48] sm:$0xff]
        %v896 = vld [vmem:[%s885 + $0x50] sm:$0xff]
        %v897 = vld [vmem:[%s885 + $0x58] sm:$0xff]
        %v898 = vld [vmem:[%s885 + $0x60] sm:$0xff]
        %v899 = vld [vmem:[%s885 + $0x68] sm:$0xff]
        %v900 = vld [vmem:[%s885 + $0x70] sm:$0xff]
        %v901 = vld [vmem:[%s885 + $0x78] sm:$0xff]
        %v902 = vld [vmem:[%s885 + $0x80] sm:$0xff]
        %v903 = vld [vmem:[%s885 + $0x88] sm:$0xff]
        %v904 = vld [vmem:[%s885 + $0x90] sm:$0xff]
        %v905 = vld [vmem:[%s885 + $0x98] sm:$0xff]
        %v906 = vld [vmem:[%s885 + $0xa0] sm:$0xff]
        %v907 = vld [vmem:[%s885 + $0xa8] sm:$0xff]
        %v908 = vld [vmem:[%s885 + $0xb0] sm:$0xff]
        %v909 = vld [vmem:[%s885 + $0xb8] sm:$0xff]
        %v910 = vld [vmem:[%s885 + $0xc0] sm:$0xff]
        %v911 = vld [vmem:[%s885 + $0xc8] sm:$0xff]
        %v912 = vld [vmem:[%s885 + $0xd0] sm:$0xff]
        %v913 = vld [vmem:[%s885 + $0xd8] sm:$0xff]
        %v914 = vld [vmem:[%s885 + $0xe0] sm:$0xff]
        %v915 = vld [vmem:[%s885 + $0xe8] sm:$0xff]
        %v916 = vld [vmem:[%s885 + $0xf0] sm:$0xff]
        %v917 = vld [vmem:[%s885 + $0xf8] sm:$0xff]
        %918 = vmatprep.subr.mxu0 0.0
        %919 = vmatpush1.msra.mxu0 %v886
        %920 = vmatprep.subr.mxu0 0.0
        %921 = vmatpush1.msra.mxu0 %v887
        %922 = vmatprep.subr.mxu0 0.0
        %923 = vmatpush1.msra.mxu0 %v888
        %924 = vmatprep.subr.mxu0 0.0
        %925 = vmatpush1.msra.mxu0 %v889
        %926 = vmatprep.subr.mxu0 0.0
        %927 = vmatpush1.msra.mxu0 %v890
        %928 = vmatprep.subr.mxu0 0.0
        %929 = vmatpush1.msra.mxu0 %v891
        %930 = vmatprep.subr.mxu0 0.0
        %931 = vmatpush1.msra.mxu0 %v892
        %932 = vmatprep.subr.mxu0 0.0
        %933 = vmatpush1.msra.mxu0 %v893
        %934 = vmatprep.subr.mxu0 0.0
        %935 = vmatpush1.msra.mxu0 %v894
        %936 = vmatprep.subr.mxu0 0.0
        %937 = vmatpush1.msra.mxu0 %v895
        %938 = vmatprep.subr.mxu0 0.0
        %939 = vmatpush1.msra.mxu0 %v896
        %940 = vmatprep.subr.mxu0 0.0
        %941 = vmatpush1.msra.mxu0 %v897
        %942 = vmatprep.subr.mxu0 0.0
        %943 = vmatpush1.msra.mxu0 %v898
        %944 = vmatprep.subr.mxu0 0.0
        %945 = vmatpush1.msra.mxu0 %v899
        %946 = vmatprep.subr.mxu0 0.0
        %947 = vmatpush1.msra.mxu0 %v900
        %948 = vmatprep.subr.mxu0 0.0
        %949 = vmatpush1.msra.mxu0 %v901
        %950 = vmatprep.subr.mxu0 0.0
        %951 = vmatpush1.msra.mxu0 %v902
        %952 = vmatprep.subr.mxu0 0.0
        %953 = vmatpush1.msra.mxu0 %v903
        %954 = vmatprep.subr.mxu0 0.0
        %955 = vmatpush1.msra.mxu0 %v904
        %956 = vmatprep.subr.mxu0 0.0
        %957 = vmatpush1.msra.mxu0 %v905
        %958 = vmatprep.subr.mxu0 0.0
        %959 = vmatpush1.msra.mxu0 %v906
        %960 = vmatprep.subr.mxu0 0.0
        %961 = vmatpush1.msra.mxu0 %v907
        %962 = vmatprep.subr.mxu0 0.0
        %963 = vmatpush1.msra.mxu0 %v908
        %964 = vmatprep.subr.mxu0 0.0
        %965 = vmatpush1.msra.mxu0 %v909
        %966 = vmatprep.subr.mxu0 0.0
        %967 = vmatpush1.msra.mxu0 %v910
        %968 = vmatprep.subr.mxu0 0.0
        %969 = vmatpush1.msra.mxu0 %v911
        %970 = vmatprep.subr.mxu0 0.0
        %971 = vmatpush1.msra.mxu0 %v912
        %972 = vmatprep.subr.mxu0 0.0
        %973 = vmatpush1.msra.mxu0 %v913
        %974 = vmatprep.subr.mxu0 0.0
        %975 = vmatpush1.msra.mxu0 %v914
        %976 = vmatprep.subr.mxu0 0.0
        %977 = vmatpush1.msra.mxu0 %v915
        %978 = vmatprep.subr.mxu0 0.0
        %979 = vmatpush1.msra.mxu0 %v916
        %980 = vmatprep.subr.mxu0 0.0
        %981 = vmatpush1.msra.mxu0 %v917
        %982 = vmatprep.mubr.f32.mxu0 %v737
        %983 = vmatmul.mubr.f32.gmra.mrb[0].mxu0 %v735
        %v984 = vpop.f32.mrb[0].mxu0
        %v985 = vadd.f32 0.0, %v984
        %v986 = vpop.f32.mrb[0].mxu0
        %987 = vmatprep.mubr.f32.mxu0 %v743
        %988 = vmatmul.mubr.f32.gmra.mrb[0].mxu0 %v741
        %v989 = vpop.f32.mrb[0].mxu0
        %v990 = vadd.f32 0.0, %v989
        %v991 = vpop.f32.mrb[0].mxu0
        %992 = vmatprep.mubr.f32.mxu0 %v749
        %993 = vmatmul.mubr.f32.gmra.mrb[0].mxu0 %v747
        %v994 = vpop.f32.mrb[0].mxu0
        %v995 = vadd.f32 0.0, %v994
        %v996 = vpop.f32.mrb[0].mxu0
        %997 = vmatprep.mubr.f32.mxu0 %v755
        %998 = vmatmul.mubr.f32.gmra.mrb[0].mxu0 %v753
        %v999 = vpop.f32.mrb[0].mxu0
        %v1000 = vadd.f32 0.0, %v999
        %v1001 = vpop.f32.mrb[0].mxu0
        %1002 = vmatprep.mubr.f32.mxu0 %v761
        %1003 = vmatmul.mubr.f32.gmra.mrb[0].mxu0 %v759
        %v1004 = vpop.f32.mrb[0].mxu0
        %v1005 = vadd.f32 0.0, %v1004
        %v1006 = vpop.f32.mrb[0].mxu0
        %1007 = vdwg.mxu0
        %v1008 = vmax.f32 %v862, %v985
        %v1009 = vmax.f32 %v867, %v990
        %v1010 = vmax.f32 %v872, %v995
        %v1011 = vmax.f32 %v877, %v1000
        %v1012 = vmax.f32 %v882, %v1005
        %s1013 = scalar_lea.vmem %s4, 512
        %v1014 = vld [vmem:[%s1013] sm:$0xff]
        %v1015 = vld [vmem:[%s1013 + $0x8] sm:$0xff]
        %v1016 = vld [vmem:[%s1013 + $0x10] sm:$0xff]
        %v1017 = vld [vmem:[%s1013 + $0x18] sm:$0xff]
        %v1018 = vld [vmem:[%s1013 + $0x20] sm:$0xff]
        %v1019 = vld [vmem:[%s1013 + $0x28] sm:$0xff]
        %v1020 = vld [vmem:[%s1013 + $0x30] sm:$0xff]
        %v1021 = vld [vmem:[%s1013 + $0x38] sm:$0xff]
        %v1022 = vld [vmem:[%s1013 + $0x40] sm:$0xff]
        %v1023 = vld [vmem:[%s1013 + $0x48] sm:$0xff]
        %v1024 = vld [vmem:[%s1013 + $0x50] sm:$0xff]
        %v1025 = vld [vmem:[%s1013 + $0x58] sm:$0xff]
        %v1026 = vld [vmem:[%s1013 + $0x60] sm:$0xff]
        %v1027 = vld [vmem:[%s1013 + $0x68] sm:$0xff]
        %v1028 = vld [vmem:[%s1013 + $0x70] sm:$0xff]
        %v1029 = vld [vmem:[%s1013 + $0x78] sm:$0xff]
        %v1030 = vld [vmem:[%s1013 + $0x80] sm:$0xff]
        %v1031 = vld [vmem:[%s1013 + $0x88] sm:$0xff]
        %v1032 = vld [vmem:[%s1013 + $0x90] sm:$0xff]
        %v1033 = vld [vmem:[%s1013 + $0x98] sm:$0xff]
        %v1034 = vld [vmem:[%s1013 + $0xa0] sm:$0xff]
        %v1035 = vld [vmem:[%s1013 + $0xa8] sm:$0xff]
        %v1036 = vld [vmem:[%s1013 + $0xb0] sm:$0xff]
        %v1037 = vld [vmem:[%s1013 + $0xb8] sm:$0xff]
        %v1038 = vld [vmem:[%s1013 + $0xc0] sm:$0xff]
        %v1039 = vld [vmem:[%s1013 + $0xc8] sm:$0xff]
        %v1040 = vld [vmem:[%s1013 + $0xd0] sm:$0xff]
        %v1041 = vld [vmem:[%s1013 + $0xd8] sm:$0xff]
        %v1042 = vld [vmem:[%s1013 + $0xe0] sm:$0xff]
        %v1043 = vld [vmem:[%s1013 + $0xe8] sm:$0xff]
        %v1044 = vld [vmem:[%s1013 + $0xf0] sm:$0xff]
        %v1045 = vld [vmem:[%s1013 + $0xf8] sm:$0xff]
        %1046 = vmatprep.subr.mxu0 0.0
        %1047 = vmatpush1.msra.mxu0 %v1014
        %1048 = vmatprep.subr.mxu0 0.0
        %1049 = vmatpush1.msra.mxu0 %v1015
        %1050 = vmatprep.subr.mxu0 0.0
        %1051 = vmatpush1.msra.mxu0 %v1016
        %1052 = vmatprep.subr.mxu0 0.0
        %1053 = vmatpush1.msra.mxu0 %v1017
        %1054 = vmatprep.subr.mxu0 0.0
        %1055 = vmatpush1.msra.mxu0 %v1018
        %1056 = vmatprep.subr.mxu0 0.0
        %1057 = vmatpush1.msra.mxu0 %v1019
        %1058 = vmatprep.subr.mxu0 0.0
        %1059 = vmatpush1.msra.mxu0 %v1020
        %1060 = vmatprep.subr.mxu0 0.0
        %1061 = vmatpush1.msra.mxu0 %v1021
        %1062 = vmatprep.subr.mxu0 0.0
        %1063 = vmatpush1.msra.mxu0 %v1022
        %1064 = vmatprep.subr.mxu0 0.0
        %1065 = vmatpush1.msra.mxu0 %v1023
        %1066 = vmatprep.subr.mxu0 0.0
        %1067 = vmatpush1.msra.mxu0 %v1024
        %1068 = vmatprep.subr.mxu0 0.0
        %1069 = vmatpush1.msra.mxu0 %v1025
        %1070 = vmatprep.subr.mxu0 0.0
        %1071 = vmatpush1.msra.mxu0 %v1026
        %1072 = vmatprep.subr.mxu0 0.0
        %1073 = vmatpush1.msra.mxu0 %v1027
        %1074 = vmatprep.subr.mxu0 0.0
        %1075 = vmatpush1.msra.mxu0 %v1028
        %1076 = vmatprep.subr.mxu0 0.0
        %1077 = vmatpush1.msra.mxu0 %v1029
        %1078 = vmatprep.subr.mxu0 0.0
        %1079 = vmatpush1.msra.mxu0 %v1030
        %1080 = vmatprep.subr.mxu0 0.0
        %1081 = vmatpush1.msra.mxu0 %v1031
        %1082 = vmatprep.subr.mxu0 0.0
        %1083 = vmatpush1.msra.mxu0 %v1032
        %1084 = vmatprep.subr.mxu0 0.0
        %1085 = vmatpush1.msra.mxu0 %v1033
        %1086 = vmatprep.subr.mxu0 0.0
        %1087 = vmatpush1.msra.mxu0 %v1034
        %1088 = vmatprep.subr.mxu0 0.0
        %1089 = vmatpush1.msra.mxu0 %v1035
        %1090 = vmatprep.subr.mxu0 0.0
        %1091 = vmatpush1.msra.mxu0 %v1036
        %1092 = vmatprep.subr.mxu0 0.0
        %1093 = vmatpush1.msra.mxu0 %v1037
        %1094 = vmatprep.subr.mxu0 0.0
        %1095 = vmatpush1.msra.mxu0 %v1038
        %1096 = vmatprep.subr.mxu0 0.0
        %1097 = vmatpush1.msra.mxu0 %v1039
        %1098 = vmatprep.subr.mxu0 0.0
        %1099 = vmatpush1.msra.mxu0 %v1040
        %1100 = vmatprep.subr.mxu0 0.0
        %1101 = vmatpush1.msra.mxu0 %v1041
        %1102 = vmatprep.subr.mxu0 0.0
        %1103 = vmatpush1.msra.mxu0 %v1042
        %1104 = vmatprep.subr.mxu0 0.0
        %1105 = vmatpush1.msra.mxu0 %v1043
        %1106 = vmatprep.subr.mxu0 0.0
        %1107 = vmatpush1.msra.mxu0 %v1044
        %1108 = vmatprep.subr.mxu0 0.0
        %1109 = vmatpush1.msra.mxu0 %v1045
        %1110 = vmatprep.mubr.f32.mxu0 %v737
        %1111 = vmatmul.mubr.f32.gmra.mrb[0].mxu0 %v735
        %v1112 = vpop.f32.mrb[0].mxu0
        %v1113 = vadd.f32 0.0, %v1112
        %v1114 = vpop.f32.mrb[0].mxu0
        %1115 = vmatprep.mubr.f32.mxu0 %v743
        %1116 = vmatmul.mubr.f32.gmra.mrb[0].mxu0 %v741
        %v1117 = vpop.f32.mrb[0].mxu0
        %v1118 = vadd.f32 0.0, %v1117
        %v1119 = vpop.f32.mrb[0].mxu0
        %1120 = vmatprep.mubr.f32.mxu0 %v749
        %1121 = vmatmul.mubr.f32.gmra.mrb[0].mxu0 %v747
        %v1122 = vpop.f32.mrb[0].mxu0
        %v1123 = vadd.f32 0.0, %v1122
        %v1124 = vpop.f32.mrb[0].mxu0
        %1125 = vmatprep.mubr.f32.mxu0 %v755
        %1126 = vmatmul.mubr.f32.gmra.mrb[0].mxu0 %v753
        %v1127 = vpop.f32.mrb[0].mxu0
        %v1128 = vadd.f32 0.0, %v1127
        %v1129 = vpop.f32.mrb[0].mxu0
        %1130 = vmatprep.mubr.f32.mxu0 %v761
        %1131 = vmatmul.mubr.f32.gmra.mrb[0].mxu0 %v759
        %v1132 = vpop.f32.mrb[0].mxu0
        %v1133 = vadd.f32 0.0, %v1132
        %v1134 = vpop.f32.mrb[0].mxu0
        %1135 = vdwg.mxu0
        %v1136 = vmax.f32 %v1008, %v1113
        %v1137 = vmax.f32 %v1009, %v1118
        %v1138 = vmax.f32 %v1010, %v1123
        %v1139 = vmax.f32 %v1011, %v1128
        %v1140 = vmax.f32 %v1012, %v1133
        %s1141 = scalar_lea.vmem %s4, 768
        %v1142 = vld [vmem:[%s1141] sm:$0xff]
        %v1143 = vld [vmem:[%s1141 + $0x8] sm:$0xff]
        %v1144 = vld [vmem:[%s1141 + $0x10] sm:$0xff]
        %v1145 = vld [vmem:[%s1141 + $0x18] sm:$0xff]
        %v1146 = vld [vmem:[%s1141 + $0x20] sm:$0xff]
        %v1147 = vld [vmem:[%s1141 + $0x28] sm:$0xff]
        %v1148 = vld [vmem:[%s1141 + $0x30] sm:$0xff]
        %v1149 = vld [vmem:[%s1141 + $0x38] sm:$0xff]
        %v1150 = vld [vmem:[%s1141 + $0x40] sm:$0xff]
        %v1151 = vld [vmem:[%s1141 + $0x48] sm:$0xff]
        %v1152 = vld [vmem:[%s1141 + $0x50] sm:$0xff]
        %v1153 = vld [vmem:[%s1141 + $0x58] sm:$0xff]
        %v1154 = vld [vmem:[%s1141 + $0x60] sm:$0xff]
        %v1155 = vld [vmem:[%s1141 + $0x68] sm:$0xff]
        %v1156 = vld [vmem:[%s1141 + $0x70] sm:$0xff]
        %v1157 = vld [vmem:[%s1141 + $0x78] sm:$0xff]
        %v1158 = vld [vmem:[%s1141 + $0x80] sm:$0xff]
        %v1159 = vld [vmem:[%s1141 + $0x88] sm:$0xff]
        %v1160 = vld [vmem:[%s1141 + $0x90] sm:$0xff]
        %v1161 = vld [vmem:[%s1141 + $0x98] sm:$0xff]
        %v1162 = vld [vmem:[%s1141 + $0xa0] sm:$0xff]
        %v1163 = vld [vmem:[%s1141 + $0xa8] sm:$0xff]
        %v1164 = vld [vmem:[%s1141 + $0xb0] sm:$0xff]
        %v1165 = vld [vmem:[%s1141 + $0xb8] sm:$0xff]
        %v1166 = vld [vmem:[%s1141 + $0xc0] sm:$0xff]
        %v1167 = vld [vmem:[%s1141 + $0xc8] sm:$0xff]
        %v1168 = vld [vmem:[%s1141 + $0xd0] sm:$0xff]
        %v1169 = vld [vmem:[%s1141 + $0xd8] sm:$0xff]
        %v1170 = vld [vmem:[%s1141 + $0xe0] sm:$0xff]
        %v1171 = vld [vmem:[%s1141 + $0xe8] sm:$0xff]
        %v1172 = vld [vmem:[%s1141 + $0xf0] sm:$0xff]
        %v1173 = vld [vmem:[%s1141 + $0xf8] sm:$0xff]
        %1174 = vmatprep.subr.mxu0 0.0
        %1175 = vmatpush1.msra.mxu0 %v1142
        %1176 = vmatprep.subr.mxu0 0.0
        %1177 = vmatpush1.msra.mxu0 %v1143
        %1178 = vmatprep.subr.mxu0 0.0
        %1179 = vmatpush1.msra.mxu0 %v1144
        %1180 = vmatprep.subr.mxu0 0.0
        %1181 = vmatpush1.msra.mxu0 %v1145
        %1182 = vmatprep.subr.mxu0 0.0
        %1183 = vmatpush1.msra.mxu0 %v1146
        %1184 = vmatprep.subr.mxu0 0.0
        %1185 = vmatpush1.msra.mxu0 %v1147
        %1186 = vmatprep.subr.mxu0 0.0
        %1187 = vmatpush1.msra.mxu0 %v1148
        %1188 = vmatprep.subr.mxu0 0.0
        %1189 = vmatpush1.msra.mxu0 %v1149
        %1190 = vmatprep.subr.mxu0 0.0
        %1191 = vmatpush1.msra.mxu0 %v1150
        %1192 = vmatprep.subr.mxu0 0.0
        %1193 = vmatpush1.msra.mxu0 %v1151
        %1194 = vmatprep.subr.mxu0 0.0
        %1195 = vmatpush1.msra.mxu0 %v1152
        %1196 = vmatprep.subr.mxu0 0.0
        %1197 = vmatpush1.msra.mxu0 %v1153
        %1198 = vmatprep.subr.mxu0 0.0
        %1199 = vmatpush1.msra.mxu0 %v1154
        %1200 = vmatprep.subr.mxu0 0.0
        %1201 = vmatpush1.msra.mxu0 %v1155
        %1202 = vmatprep.subr.mxu0 0.0
        %1203 = vmatpush1.msra.mxu0 %v1156
        %1204 = vmatprep.subr.mxu0 0.0
        %1205 = vmatpush1.msra.mxu0 %v1157
        %1206 = vmatprep.subr.mxu0 0.0
        %1207 = vmatpush1.msra.mxu0 %v1158
        %1208 = vmatprep.subr.mxu0 0.0
        %1209 = vmatpush1.msra.mxu0 %v1159
        %1210 = vmatprep.subr.mxu0 0.0
        %1211 = vmatpush1.msra.mxu0 %v1160
        %1212 = vmatprep.subr.mxu0 0.0
        %1213 = vmatpush1.msra.mxu0 %v1161
        %1214 = vmatprep.subr.mxu0 0.0
        %1215 = vmatpush1.msra.mxu0 %v1162
        %1216 = vmatprep.subr.mxu0 0.0
        %1217 = vmatpush1.msra.mxu0 %v1163
        %1218 = vmatprep.subr.mxu0 0.0
        %1219 = vmatpush1.msra.mxu0 %v1164
        %1220 = vmatprep.subr.mxu0 0.0
        %1221 = vmatpush1.msra.mxu0 %v1165
        %1222 = vmatprep.subr.mxu0 0.0
        %1223 = vmatpush1.msra.mxu0 %v1166
        %1224 = vmatprep.subr.mxu0 0.0
        %1225 = vmatpush1.msra.mxu0 %v1167
        %1226 = vmatprep.subr.mxu0 0.0
        %1227 = vmatpush1.msra.mxu0 %v1168
        %1228 = vmatprep.subr.mxu0 0.0
        %1229 = vmatpush1.msra.mxu0 %v1169
        %1230 = vmatprep.subr.mxu0 0.0
        %1231 = vmatpush1.msra.mxu0 %v1170
        %1232 = vmatprep.subr.mxu0 0.0
        %1233 = vmatpush1.msra.mxu0 %v1171
        %1234 = vmatprep.subr.mxu0 0.0
        %1235 = vmatpush1.msra.mxu0 %v1172
        %1236 = vmatprep.subr.mxu0 0.0
        %1237 = vmatpush1.msra.mxu0 %v1173
        %1238 = vmatprep.mubr.f32.mxu0 %v737
        %1239 = vmatmul.mubr.f32.gmra.mrb[0].mxu0 %v735
        %v1240 = vpop.f32.mrb[0].mxu0
        %v1241 = vadd.f32 0.0, %v1240
        %v1242 = vpop.f32.mrb[0].mxu0
        %1243 = vmatprep.mubr.f32.mxu0 %v743
        %1244 = vmatmul.mubr.f32.gmra.mrb[0].mxu0 %v741
        %v1245 = vpop.f32.mrb[0].mxu0
        %v1246 = vadd.f32 0.0, %v1245
        %v1247 = vpop.f32.mrb[0].mxu0
        %1248 = vmatprep.mubr.f32.mxu0 %v749
        %1249 = vmatmul.mubr.f32.gmra.mrb[0].mxu0 %v747
        %v1250 = vpop.f32.mrb[0].mxu0
        %v1251 = vadd.f32 0.0, %v1250
        %v1252 = vpop.f32.mrb[0].mxu0
        %1253 = vmatprep.mubr.f32.mxu0 %v755
        %1254 = vmatmul.mubr.f32.gmra.mrb[0].mxu0 %v753
        %v1255 = vpop.f32.mrb[0].mxu0
        %v1256 = vadd.f32 0.0, %v1255
        %v1257 = vpop.f32.mrb[0].mxu0
        %1258 = vmatprep.mubr.f32.mxu0 %v761
        %1259 = vmatmul.mubr.f32.gmra.mrb[0].mxu0 %v759
        %v1260 = vpop.f32.mrb[0].mxu0
        %v1261 = vadd.f32 0.0, %v1260
        %v1262 = vpop.f32.mrb[0].mxu0
        %1263 = vdwg.mxu0
        %v1264 = vmax.f32 %v1136, %v1241
        %v1265 = vmax.f32 %v1137, %v1246
        %v1266 = vmax.f32 %v1138, %v1251
        %v1267 = vmax.f32 %v1139, %v1256
        %v1268 = vmax.f32 %v1140, %v1261
        %vm1269 = vcmask 64512
        %v1271 = vsel %vm1269, %v490, 0
        %v1274 = vsel %vm1269, %v495, 0
        %v1277 = vsel %vm1269, %v500, 0
        %v1280 = vsel %vm1269, %v505, 0
        %v1283 = vsel %vm1269, %v510, 0
        %v1286 = vsel %vm1269, %v515, 0
        %v1289 = vsel %vm1269, %v520, 0
        %v1292 = vsel %vm1269, %v525, 0
        %v1295 = vsel %vm1269, %v530, 0
        %v1298 = vsel %vm1269, %v535, 0
        %v1301 = vsel %vm1269, %v540, 0
        %v1304 = vsel %vm1269, %v545, 0
        %v1307 = vsel %vm1269, %v550, 0
        %v1310 = vsel %vm1269, %v555, 0
        %v1313 = vsel %vm1269, %v560, 0
        %v1316 = vsel %vm1269, %v565, 0
        %v1319 = vsel %vm1269, %v570, 0
        %v1322 = vsel %vm1269, %v575, 0
        %v1325 = vsel %vm1269, %v580, 0
        %v1328 = vsel %vm1269, %v585, 0
        %v1331 = vsel %vm1269, %v590, 0
        %v1334 = vsel %vm1269, %v595, 0
        %v1337 = vsel %vm1269, %v600, 0
        %v1340 = vsel %vm1269, %v605, 0
        %v1343 = vsel %vm1269, %v610, 0
        %v1346 = vsel %vm1269, %v615, 0
        %v1349 = vsel %vm1269, %v620, 0
        %v1352 = vsel %vm1269, %v625, 0
        %v1355 = vsel %vm1269, %v630, 0
        %v1358 = vsel %vm1269, %v635, 0
        %v1361 = vsel %vm1269, %v640, 0
        %v1364 = vsel %vm1269, %v645, 0
        %1366 = vmatprep.subr.mxu0 0.0
        %1367 = vmatpush1.msra.mxu0 %v1264
        %1368 = vmatprep.subr.mxu0 0.0
        %1369 = vmatpush1.msra.mxu0 0.0
        %1370 = vmatprep.subr.mxu0 0.0
        %1371 = vmatpush1.msra.mxu0 0.0
        %1372 = vmatprep.subr.mxu0 0.0
        %1373 = vmatpush1.msra.mxu0 0.0
        %1374 = vmatprep.subr.mxu0 0.0
        %1375 = vmatpush1.msra.mxu0 0.0
        %1376 = vmatprep.subr.mxu0 0.0
        %1377 = vmatpush1.msra.mxu0 0.0
        %1378 = vmatprep.subr.mxu0 0.0
        %1379 = vmatpush1.msra.mxu0 0.0
        %1380 = vmatprep.subr.mxu0 0.0
        %1381 = vmatpush1.msra.mxu0 0.0
        %1382 = vmatprep.subr.mxu0 0.0
        %1383 = vmatpush1.msra.mxu0 0.0
        %1384 = vmatprep.subr.mxu0 0.0
        %1385 = vmatpush1.msra.mxu0 0.0
        %1386 = vmatprep.subr.mxu0 0.0
        %1387 = vmatpush1.msra.mxu0 0.0
        %1388 = vmatprep.subr.mxu0 0.0
        %1389 = vmatpush1.msra.mxu0 0.0
        %1390 = vmatprep.subr.mxu0 0.0
        %1391 = vmatpush1.msra.mxu0 0.0
        %1392 = vmatprep.subr.mxu0 0.0
        %1393 = vmatpush1.msra.mxu0 0.0
        %1394 = vmatprep.subr.mxu0 0.0
        %1395 = vmatpush1.msra.mxu0 0.0
        %1396 = vmatprep.subr.mxu0 0.0
        %1397 = vmatpush1.msra.mxu0 0.0
        %1398 = vmatprep.subr.mxu0 0.0
        %1399 = vmatpush1.msra.mxu0 0.0
        %1400 = vmatprep.subr.mxu0 0.0
        %1401 = vmatpush1.msra.mxu0 0.0
        %1402 = vmatprep.subr.mxu0 0.0
        %1403 = vmatpush1.msra.mxu0 0.0
        %1404 = vmatprep.subr.mxu0 0.0
        %1405 = vmatpush1.msra.mxu0 0.0
        %1406 = vmatprep.subr.mxu0 0.0
        %1407 = vmatpush1.msra.mxu0 0.0
        %1408 = vmatprep.subr.mxu0 0.0
        %1409 = vmatpush1.msra.mxu0 0.0
        %1410 = vmatprep.subr.mxu0 0.0
        %1411 = vmatpush1.msra.mxu0 0.0
        %1412 = vmatprep.subr.mxu0 0.0
        %1413 = vmatpush1.msra.mxu0 0.0
        %1414 = vmatprep.subr.mxu0 0.0
        %1415 = vmatpush1.msra.mxu0 0.0
        %1416 = vmatprep.subr.mxu0 0.0
        %1417 = vmatpush1.msra.mxu0 0.0
        %1418 = vmatprep.subr.mxu0 0.0
        %1419 = vmatpush1.msra.mxu0 0.0
        %1420 = vmatprep.subr.mxu0 0.0
        %1421 = vmatpush1.msra.mxu0 0.0
        %1422 = vmatprep.subr.mxu0 0.0
        %1423 = vmatpush1.msra.mxu0 0.0
        %1424 = vmatprep.subr.mxu0 0.0
        %1425 = vmatpush1.msra.mxu0 0.0
        %1426 = vmatprep.subr.mxu0 0.0
        %1427 = vmatpush1.msra.mxu0 0.0
        %1428 = vmatprep.subr.mxu0 0.0
        %1429 = vmatpush1.msra.mxu0 0.0
        %1430 = vmatprep.mubr.f32.mxu0 0.0
        %1431 = vmatmul.mubr.f32.gmra.mrb[0].mxu0 %v1271
        %v1432 = vpop.f32.mrb[0].mxu0
        %v1433 = vadd.f32 0.0, %v1432
        %v1434 = vpop.f32.mrb[0].mxu0
        %1435 = vmatprep.mubr.f32.mxu0 0.0
        %1436 = vmatmul.mubr.f32.gmra.mrb[0].mxu0 %v1274
        %v1437 = vpop.f32.mrb[0].mxu0
        %v1438 = vadd.f32 0.0, %v1437
        %v1439 = vpop.f32.mrb[0].mxu0
        %1440 = vmatprep.mubr.f32.mxu0 0.0
        %1441 = vmatmul.mubr.f32.gmra.mrb[0].mxu0 %v1277
        %v1442 = vpop.f32.mrb[0].mxu0
        %v1443 = vadd.f32 0.0, %v1442
        %v1444 = vpop.f32.mrb[0].mxu0
        %1445 = vmatprep.mubr.f32.mxu0 0.0
        %1446 = vmatmul.mubr.f32.gmra.mrb[0].mxu0 %v1280
        %v1447 = vpop.f32.mrb[0].mxu0
        %v1448 = vadd.f32 0.0, %v1447
        %v1449 = vpop.f32.mrb[0].mxu0
        %1450 = vmatprep.mubr.f32.mxu0 0.0
        %1451 = vmatmul.mubr.f32.gmra.mrb[0].mxu0 %v1283
        %v1452 = vpop.f32.mrb[0].mxu0
        %v1453 = vadd.f32 0.0, %v1452
        %v1454 = vpop.f32.mrb[0].mxu0
        %1455 = vmatprep.mubr.f32.mxu0 0.0
        %1456 = vmatmul.mubr.f32.gmra.mrb[0].mxu0 %v1286
        %v1457 = vpop.f32.mrb[0].mxu0
        %v1458 = vadd.f32 0.0, %v1457
        %v1459 = vpop.f32.mrb[0].mxu0
        %1460 = vmatprep.mubr.f32.mxu0 0.0
        %1461 = vmatmul.mubr.f32.gmra.mrb[0].mxu0 %v1289
        %v1462 = vpop.f32.mrb[0].mxu0
        %v1463 = vadd.f32 0.0, %v1462
        %v1464 = vpop.f32.mrb[0].mxu0
        %1465 = vmatprep.mubr.f32.mxu0 0.0
        %1466 = vmatmul.mubr.f32.gmra.mrb[0].mxu0 %v1292
        %v1467 = vpop.f32.mrb[0].mxu0
        %v1468 = vadd.f32 0.0, %v1467
        %v1469 = vpop.f32.mrb[0].mxu0
        %1470 = vmatprep.mubr.f32.mxu0 0.0
        %1471 = vmatmul.mubr.f32.gmra.mrb[0].mxu0 %v1295
        %v1472 = vpop.f32.mrb[0].mxu0
        %v1473 = vadd.f32 0.0, %v1472
        %v1474 = vpop.f32.mrb[0].mxu0
        %1475 = vmatprep.mubr.f32.mxu0 0.0
        %1476 = vmatmul.mubr.f32.gmra.mrb[0].mxu0 %v1298
        %v1477 = vpop.f32.mrb[0].mxu0
        %v1478 = vadd.f32 0.0, %v1477
        %v1479 = vpop.f32.mrb[0].mxu0
        %1480 = vmatprep.mubr.f32.mxu0 0.0
        %1481 = vmatmul.mubr.f32.gmra.mrb[0].mxu0 %v1301
        %v1482 = vpop.f32.mrb[0].mxu0
        %v1483 = vadd.f32 0.0, %v1482
        %v1484 = vpop.f32.mrb[0].mxu0
        %1485 = vmatprep.mubr.f32.mxu0 0.0
        %1486 = vmatmul.mubr.f32.gmra.mrb[0].mxu0 %v1304
        %v1487 = vpop.f32.mrb[0].mxu0
        %v1488 = vadd.f32 0.0, %v1487
        %v1489 = vpop.f32.mrb[0].mxu0
        %1490 = vmatprep.mubr.f32.mxu0 0.0
        %1491 = vmatmul.mubr.f32.gmra.mrb[0].mxu0 %v1307
        %v1492 = vpop.f32.mrb[0].mxu0
        %v1493 = vadd.f32 0.0, %v1492
        %v1494 = vpop.f32.mrb[0].mxu0
        %1495 = vmatprep.mubr.f32.mxu0 0.0
        %1496 = vmatmul.mubr.f32.gmra.mrb[0].mxu0 %v1310
        %v1497 = vpop.f32.mrb[0].mxu0
        %v1498 = vadd.f32 0.0, %v1497
        %v1499 = vpop.f32.mrb[0].mxu0
        %1500 = vmatprep.mubr.f32.mxu0 0.0
        %1501 = vmatmul.mubr.f32.gmra.mrb[0].mxu0 %v1313
        %v1502 = vpop.f32.mrb[0].mxu0
        %v1503 = vadd.f32 0.0, %v1502
        %v1504 = vpop.f32.mrb[0].mxu0
        %1505 = vmatprep.mubr.f32.mxu0 0.0
        %1506 = vmatmul.mubr.f32.gmra.mrb[0].mxu0 %v1316
        %v1507 = vpop.f32.mrb[0].mxu0
        %v1508 = vadd.f32 0.0, %v1507
        %v1509 = vpop.f32.mrb[0].mxu0
        %1510 = vmatprep.mubr.f32.mxu0 0.0
        %1511 = vmatmul.mubr.f32.gmra.mrb[0].mxu0 %v1319
        %v1512 = vpop.f32.mrb[0].mxu0
        %v1513 = vadd.f32 0.0, %v1512
        %v1514 = vpop.f32.mrb[0].mxu0
        %1515 = vmatprep.mubr.f32.mxu0 0.0
        %1516 = vmatmul.mubr.f32.gmra.mrb[0].mxu0 %v1322
        %v1517 = vpop.f32.mrb[0].mxu0
        %v1518 = vadd.f32 0.0, %v1517
        %v1519 = vpop.f32.mrb[0].mxu0
        %1520 = vmatprep.mubr.f32.mxu0 0.0
        %1521 = vmatmul.mubr.f32.gmra.mrb[0].mxu0 %v1325
        %v1522 = vpop.f32.mrb[0].mxu0
        %v1523 = vadd.f32 0.0, %v1522
        %v1524 = vpop.f32.mrb[0].mxu0
        %1525 = vmatprep.mubr.f32.mxu0 0.0
        %1526 = vmatmul.mubr.f32.gmra.mrb[0].mxu0 %v1328
        %v1527 = vpop.f32.mrb[0].mxu0
        %v1528 = vadd.f32 0.0, %v1527
        %v1529 = vpop.f32.mrb[0].mxu0
        %1530 = vmatprep.mubr.f32.mxu0 0.0
        %1531 = vmatmul.mubr.f32.gmra.mrb[0].mxu0 %v1331
        %v1532 = vpop.f32.mrb[0].mxu0
        %v1533 = vadd.f32 0.0, %v1532
        %v1534 = vpop.f32.mrb[0].mxu0
        %1535 = vmatprep.mubr.f32.mxu0 0.0
        %1536 = vmatmul.mubr.f32.gmra.mrb[0].mxu0 %v1334
        %v1537 = vpop.f32.mrb[0].mxu0
        %v1538 = vadd.f32 0.0, %v1537
        %v1539 = vpop.f32.mrb[0].mxu0
        %1540 = vmatprep.mubr.f32.mxu0 0.0
        %1541 = vmatmul.mubr.f32.gmra.mrb[0].mxu0 %v1337
        %v1542 = vpop.f32.mrb[0].mxu0
        %v1543 = vadd.f32 0.0, %v1542
        %v1544 = vpop.f32.mrb[0].mxu0
        %1545 = vmatprep.mubr.f32.mxu0 0.0
        %1546 = vmatmul.mubr.f32.gmra.mrb[0].mxu0 %v1340
        %v1547 = vpop.f32.mrb[0].mxu0
        %v1548 = vadd.f32 0.0, %v1547
        %v1549 = vpop.f32.mrb[0].mxu0
        %1550 = vmatprep.mubr.f32.mxu0 0.0
        %1551 = vmatmul.mubr.f32.gmra.mrb[0].mxu0 %v1343
        %v1552 = vpop.f32.mrb[0].mxu0
        %v1553 = vadd.f32 0.0, %v1552
        %v1554 = vpop.f32.mrb[0].mxu0
        %1555 = vmatprep.mubr.f32.mxu0 0.0
        %1556 = vmatmul.mubr.f32.gmra.mrb[0].mxu0 %v1346
        %v1557 = vpop.f32.mrb[0].mxu0
        %v1558 = vadd.f32 0.0, %v1557
        %v1559 = vpop.f32.mrb[0].mxu0
        %1560 = vmatprep.mubr.f32.mxu0 0.0
        %1561 = vmatmul.mubr.f32.gmra.mrb[0].mxu0 %v1349
        %v1562 = vpop.f32.mrb[0].mxu0
        %v1563 = vadd.f32 0.0, %v1562
        %v1564 = vpop.f32.mrb[0].mxu0
        %1565 = vmatprep.mubr.f32.mxu0 0.0
        %1566 = vmatmul.mubr.f32.gmra.mrb[0].mxu0 %v1352
        %v1567 = vpop.f32.mrb[0].mxu0
        %v1568 = vadd.f32 0.0, %v1567
        %v1569 = vpop.f32.mrb[0].mxu0
        %1570 = vmatprep.mubr.f32.mxu0 0.0
        %1571 = vmatmul.mubr.f32.gmra.mrb[0].mxu0 %v1355
        %v1572 = vpop.f32.mrb[0].mxu0
        %v1573 = vadd.f32 0.0, %v1572
        %v1574 = vpop.f32.mrb[0].mxu0
        %1575 = vmatprep.mubr.f32.mxu0 0.0
        %1576 = vmatmul.mubr.f32.gmra.mrb[0].mxu0 %v1358
        %v1577 = vpop.f32.mrb[0].mxu0
        %v1578 = vadd.f32 0.0, %v1577
        %v1579 = vpop.f32.mrb[0].mxu0
        %1580 = vmatprep.mubr.f32.mxu0 0.0
        %1581 = vmatmul.mubr.f32.gmra.mrb[0].mxu0 %v1361
        %v1582 = vpop.f32.mrb[0].mxu0
        %v1583 = vadd.f32 0.0, %v1582
        %v1584 = vpop.f32.mrb[0].mxu0
        %1585 = vmatprep.mubr.f32.mxu0 0.0
        %1586 = vmatmul.mubr.f32.gmra.mrb[0].mxu0 %v1364
        %v1587 = vpop.f32.mrb[0].mxu0
        %v1588 = vadd.f32 0.0, %v1587
        %v1589 = vpop.f32.mrb[0].mxu0
        %1590 = vdwg.mxu0
        %v1591 = vsel %vm326, %v1433, -inf
        %1592 = vmax.xlane.f32.xlu0 %v1591
        %v1593 = vpop.xlane.xlu0 %1592
        %v1594 = vsel %vm326, %v1438, -inf
        %1595 = vmax.xlane.f32.xlu0 %v1594
        %v1596 = vpop.xlane.xlu0 %1595
        %v1597 = vsel %vm326, %v1443, -inf
        %1598 = vmax.xlane.f32.xlu0 %v1597
        %v1599 = vpop.xlane.xlu0 %1598
        %v1600 = vsel %vm326, %v1448, -inf
        %1601 = vmax.xlane.f32.xlu0 %v1600
        %v1602 = vpop.xlane.xlu0 %1601
        %v1603 = vsel %vm326, %v1453, -inf
        %1604 = vmax.xlane.f32.xlu0 %v1603
        %v1605 = vpop.xlane.xlu0 %1604
        %v1606 = vsel %vm326, %v1458, -inf
        %1607 = vmax.xlane.f32.xlu0 %v1606
        %v1608 = vpop.xlane.xlu0 %1607
        %v1609 = vsel %vm326, %v1463, -inf
        %1610 = vmax.xlane.f32.xlu0 %v1609
        %v1611 = vpop.xlane.xlu0 %1610
        %v1612 = vsel %vm326, %v1468, -inf
        %1613 = vmax.xlane.f32.xlu0 %v1612
        %v1614 = vpop.xlane.xlu0 %1613
        %v1615 = vsel %vm326, %v1473, -inf
        %1616 = vmax.xlane.f32.xlu0 %v1615
        %v1617 = vpop.xlane.xlu0 %1616
        %v1618 = vsel %vm326, %v1478, -inf
        %1619 = vmax.xlane.f32.xlu0 %v1618
        %v1620 = vpop.xlane.xlu0 %1619
        %v1621 = vsel %vm326, %v1483, -inf
        %1622 = vmax.xlane.f32.xlu0 %v1621
        %v1623 = vpop.xlane.xlu0 %1622
        %v1624 = vsel %vm326, %v1488, -inf
        %1625 = vmax.xlane.f32.xlu0 %v1624
        %v1626 = vpop.xlane.xlu0 %1625
        %v1627 = vsel %vm326, %v1493, -inf
        %1628 = vmax.xlane.f32.xlu0 %v1627
        %v1629 = vpop.xlane.xlu0 %1628
        %v1630 = vsel %vm326, %v1498, -inf
        %1631 = vmax.xlane.f32.xlu0 %v1630
        %v1632 = vpop.xlane.xlu0 %1631
        %v1633 = vsel %vm326, %v1503, -inf
        %1634 = vmax.xlane.f32.xlu0 %v1633
        %v1635 = vpop.xlane.xlu0 %1634
        %v1636 = vsel %vm326, %v1508, -inf
        %1637 = vmax.xlane.f32.xlu0 %v1636
        %v1638 = vpop.xlane.xlu0 %1637
        %v1639 = vsel %vm326, %v1513, -inf
        %1640 = vmax.xlane.f32.xlu0 %v1639
        %v1641 = vpop.xlane.xlu0 %1640
        %v1642 = vsel %vm326, %v1518, -inf
        %1643 = vmax.xlane.f32.xlu0 %v1642
        %v1644 = vpop.xlane.xlu0 %1643
        %v1645 = vsel %vm326, %v1523, -inf
        %1646 = vmax.xlane.f32.xlu0 %v1645
        %v1647 = vpop.xlane.xlu0 %1646
        %v1648 = vsel %vm326, %v1528, -inf
        %1649 = vmax.xlane.f32.xlu0 %v1648
        %v1650 = vpop.xlane.xlu0 %1649
        %v1651 = vsel %vm326, %v1533, -inf
        %1652 = vmax.xlane.f32.xlu0 %v1651
        %v1653 = vpop.xlane.xlu0 %1652
        %v1654 = vsel %vm326, %v1538, -inf
        %1655 = vmax.xlane.f32.xlu0 %v1654
        %v1656 = vpop.xlane.xlu0 %1655
        %v1657 = vsel %vm326, %v1543, -inf
        %1658 = vmax.xlane.f32.xlu0 %v1657
        %v1659 = vpop.xlane.xlu0 %1658
        %v1660 = vsel %vm326, %v1548, -inf
        %1661 = vmax.xlane.f32.xlu0 %v1660
        %v1662 = vpop.xlane.xlu0 %1661
        %v1663 = vsel %vm326, %v1553, -inf
        %1664 = vmax.xlane.f32.xlu0 %v1663
        %v1665 = vpop.xlane.xlu0 %1664
        %v1666 = vsel %vm326, %v1558, -inf
        %1667 = vmax.xlane.f32.xlu0 %v1666
        %v1668 = vpop.xlane.xlu0 %1667
        %v1669 = vsel %vm326, %v1563, -inf
        %1670 = vmax.xlane.f32.xlu0 %v1669
        %v1671 = vpop.xlane.xlu0 %1670
        %v1672 = vsel %vm326, %v1568, -inf
        %1673 = vmax.xlane.f32.xlu0 %v1672
        %v1674 = vpop.xlane.xlu0 %1673
        %v1675 = vsel %vm326, %v1573, -inf
        %1676 = vmax.xlane.f32.xlu0 %v1675
        %v1677 = vpop.xlane.xlu0 %1676
        %v1678 = vsel %vm326, %v1578, -inf
        %1679 = vmax.xlane.f32.xlu0 %v1678
        %v1680 = vpop.xlane.xlu0 %1679
        %v1681 = vsel %vm326, %v1583, -inf
        %1682 = vmax.xlane.f32.xlu0 %v1681
        %v1683 = vpop.xlane.xlu0 %1682
        %v1684 = vsel %vm326, %v1588, -inf
        %1685 = vmax.xlane.f32.xlu0 %v1684
        %v1686 = vpop.xlane.xlu0 %1685
        %v1687 = vsub.f32 %v1433, %v1593
        %v1688 = vsub.f32 %v1438, %v1596
        %v1689 = vsub.f32 %v1443, %v1599
        %v1690 = vsub.f32 %v1448, %v1602
        %v1691 = vsub.f32 %v1453, %v1605
        %v1692 = vsub.f32 %v1458, %v1608
        %v1693 = vsub.f32 %v1463, %v1611
        %v1694 = vsub.f32 %v1468, %v1614
        %v1695 = vsub.f32 %v1473, %v1617
        %v1696 = vsub.f32 %v1478, %v1620
        %v1697 = vsub.f32 %v1483, %v1623
        %v1698 = vsub.f32 %v1488, %v1626
        %v1699 = vsub.f32 %v1493, %v1629
        %v1700 = vsub.f32 %v1498, %v1632
        %v1701 = vsub.f32 %v1503, %v1635
        %v1702 = vsub.f32 %v1508, %v1638
        %v1703 = vsub.f32 %v1513, %v1641
        %v1704 = vsub.f32 %v1518, %v1644
        %v1705 = vsub.f32 %v1523, %v1647
        %v1706 = vsub.f32 %v1528, %v1650
        %v1707 = vsub.f32 %v1533, %v1653
        %v1708 = vsub.f32 %v1538, %v1656
        %v1709 = vsub.f32 %v1543, %v1659
        %v1710 = vsub.f32 %v1548, %v1662
        %v1711 = vsub.f32 %v1553, %v1665
        %v1712 = vsub.f32 %v1558, %v1668
        %v1713 = vsub.f32 %v1563, %v1671
        %v1714 = vsub.f32 %v1568, %v1674
        %v1715 = vsub.f32 %v1573, %v1677
        %v1716 = vsub.f32 %v1578, %v1680
        %v1717 = vsub.f32 %v1583, %v1683
        %v1718 = vsub.f32 %v1588, %v1686
        %v1719 = vmul.f32 %v1687, 1.442695
        %v1720 = vpow.pop %v1719
        %v1721 = vmul.f32 %v1688, 1.442695
        %v1722 = vpow.pop %v1721
        %v1723 = vmul.f32 %v1689, 1.442695
        %v1724 = vpow.pop %v1723
        %v1725 = vmul.f32 %v1690, 1.442695
        %v1726 = vpow.pop %v1725
        %v1727 = vmul.f32 %v1691, 1.442695
        %v1728 = vpow.pop %v1727
        %v1729 = vmul.f32 %v1692, 1.442695
        %v1730 = vpow.pop %v1729
        %v1731 = vmul.f32 %v1693, 1.442695
        %v1732 = vpow.pop %v1731
        %v1733 = vmul.f32 %v1694, 1.442695
        %v1734 = vpow.pop %v1733
        %v1735 = vmul.f32 %v1695, 1.442695
        %v1736 = vpow.pop %v1735
        %v1737 = vmul.f32 %v1696, 1.442695
        %v1738 = vpow.pop %v1737
        %v1739 = vmul.f32 %v1697, 1.442695
        %v1740 = vpow.pop %v1739
        %v1741 = vmul.f32 %v1698, 1.442695
        %v1742 = vpow.pop %v1741
        %v1743 = vmul.f32 %v1699, 1.442695
        %v1744 = vpow.pop %v1743
        %v1745 = vmul.f32 %v1700, 1.442695
        %v1746 = vpow.pop %v1745
        %v1747 = vmul.f32 %v1701, 1.442695
        %v1748 = vpow.pop %v1747
        %v1749 = vmul.f32 %v1702, 1.442695
        %v1750 = vpow.pop %v1749
        %v1751 = vmul.f32 %v1703, 1.442695
        %v1752 = vpow.pop %v1751
        %v1753 = vmul.f32 %v1704, 1.442695
        %v1754 = vpow.pop %v1753
        %v1755 = vmul.f32 %v1705, 1.442695
        %v1756 = vpow.pop %v1755
        %v1757 = vmul.f32 %v1706, 1.442695
        %v1758 = vpow.pop %v1757
        %v1759 = vmul.f32 %v1707, 1.442695
        %v1760 = vpow.pop %v1759
        %v1761 = vmul.f32 %v1708, 1.442695
        %v1762 = vpow.pop %v1761
        %v1763 = vmul.f32 %v1709, 1.442695
        %v1764 = vpow.pop %v1763
        %v1765 = vmul.f32 %v1710, 1.442695
        %v1766 = vpow.pop %v1765
        %v1767 = vmul.f32 %v1711, 1.442695
        %v1768 = vpow.pop %v1767
        %v1769 = vmul.f32 %v1712, 1.442695
        %v1770 = vpow.pop %v1769
        %v1771 = vmul.f32 %v1713, 1.442695
        %v1772 = vpow.pop %v1771
        %v1773 = vmul.f32 %v1714, 1.442695
        %v1774 = vpow.pop %v1773
        %v1775 = vmul.f32 %v1715, 1.442695
        %v1776 = vpow.pop %v1775
        %v1777 = vmul.f32 %v1716, 1.442695
        %v1778 = vpow.pop %v1777
        %v1779 = vmul.f32 %v1717, 1.442695
        %v1780 = vpow.pop %v1779
        %v1781 = vmul.f32 %v1718, 1.442695
        %v1782 = vpow.pop %v1781
        %v1783 = vsel %vm326, %v1720, 0.0
        %1784 = vadd.xlane.f32.xlu0 %v1783
        %v1785 = vpop.xlane.xlu0 %1784
        %v1786 = vsel %vm326, %v1722, 0.0
        %1787 = vadd.xlane.f32.xlu0 %v1786
        %v1788 = vpop.xlane.xlu0 %1787
        %v1789 = vsel %vm326, %v1724, 0.0
        %1790 = vadd.xlane.f32.xlu0 %v1789
        %v1791 = vpop.xlane.xlu0 %1790
        %v1792 = vsel %vm326, %v1726, 0.0
        %1793 = vadd.xlane.f32.xlu0 %v1792
        %v1794 = vpop.xlane.xlu0 %1793
        %v1795 = vsel %vm326, %v1728, 0.0
        %1796 = vadd.xlane.f32.xlu0 %v1795
        %v1797 = vpop.xlane.xlu0 %1796
        %v1798 = vsel %vm326, %v1730, 0.0
        %1799 = vadd.xlane.f32.xlu0 %v1798
        %v1800 = vpop.xlane.xlu0 %1799
        %v1801 = vsel %vm326, %v1732, 0.0
        %1802 = vadd.xlane.f32.xlu0 %v1801
        %v1803 = vpop.xlane.xlu0 %1802
        %v1804 = vsel %vm326, %v1734, 0.0
        %1805 = vadd.xlane.f32.xlu0 %v1804
        %v1806 = vpop.xlane.xlu0 %1805
        %v1807 = vsel %vm326, %v1736, 0.0
        %1808 = vadd.xlane.f32.xlu0 %v1807
        %v1809 = vpop.xlane.xlu0 %1808
        %v1810 = vsel %vm326, %v1738, 0.0
        %1811 = vadd.xlane.f32.xlu0 %v1810
        %v1812 = vpop.xlane.xlu0 %1811
        %v1813 = vsel %vm326, %v1740, 0.0
        %1814 = vadd.xlane.f32.xlu0 %v1813
        %v1815 = vpop.xlane.xlu0 %1814
        %v1816 = vsel %vm326, %v1742, 0.0
        %1817 = vadd.xlane.f32.xlu0 %v1816
        %v1818 = vpop.xlane.xlu0 %1817
        %v1819 = vsel %vm326, %v1744, 0.0
        %1820 = vadd.xlane.f32.xlu0 %v1819
        %v1821 = vpop.xlane.xlu0 %1820
        %v1822 = vsel %vm326, %v1746, 0.0
        %1823 = vadd.xlane.f32.xlu0 %v1822
        %v1824 = vpop.xlane.xlu0 %1823
        %v1825 = vsel %vm326, %v1748, 0.0
        %1826 = vadd.xlane.f32.xlu0 %v1825
        %v1827 = vpop.xlane.xlu0 %1826
        %v1828 = vsel %vm326, %v1750, 0.0
        %1829 = vadd.xlane.f32.xlu0 %v1828
        %v1830 = vpop.xlane.xlu0 %1829
        %v1831 = vsel %vm326, %v1752, 0.0
        %1832 = vadd.xlane.f32.xlu0 %v1831
        %v1833 = vpop.xlane.xlu0 %1832
        %v1834 = vsel %vm326, %v1754, 0.0
        %1835 = vadd.xlane.f32.xlu0 %v1834
        %v1836 = vpop.xlane.xlu0 %1835
        %v1837 = vsel %vm326, %v1756, 0.0
        %1838 = vadd.xlane.f32.xlu0 %v1837
        %v1839 = vpop.xlane.xlu0 %1838
        %v1840 = vsel %vm326, %v1758, 0.0
        %1841 = vadd.xlane.f32.xlu0 %v1840
        %v1842 = vpop.xlane.xlu0 %1841
        %v1843 = vsel %vm326, %v1760, 0.0
        %1844 = vadd.xlane.f32.xlu0 %v1843
        %v1845 = vpop.xlane.xlu0 %1844
        %v1846 = vsel %vm326, %v1762, 0.0
        %1847 = vadd.xlane.f32.xlu0 %v1846
        %v1848 = vpop.xlane.xlu0 %1847
        %v1849 = vsel %vm326, %v1764, 0.0
        %1850 = vadd.xlane.f32.xlu0 %v1849
        %v1851 = vpop.xlane.xlu0 %1850
        %v1852 = vsel %vm326, %v1766, 0.0
        %1853 = vadd.xlane.f32.xlu0 %v1852
        %v1854 = vpop.xlane.xlu0 %1853
        %v1855 = vsel %vm326, %v1768, 0.0
        %1856 = vadd.xlane.f32.xlu0 %v1855
        %v1857 = vpop.xlane.xlu0 %1856
        %v1858 = vsel %vm326, %v1770, 0.0
        %1859 = vadd.xlane.f32.xlu0 %v1858
        %v1860 = vpop.xlane.xlu0 %1859
        %v1861 = vsel %vm326, %v1772, 0.0
        %1862 = vadd.xlane.f32.xlu0 %v1861
        %v1863 = vpop.xlane.xlu0 %1862
        %v1864 = vsel %vm326, %v1774, 0.0
        %1865 = vadd.xlane.f32.xlu0 %v1864
        %v1866 = vpop.xlane.xlu0 %1865
        %v1867 = vsel %vm326, %v1776, 0.0
        %1868 = vadd.xlane.f32.xlu0 %v1867
        %v1869 = vpop.xlane.xlu0 %1868
        %v1870 = vsel %vm326, %v1778, 0.0
        %1871 = vadd.xlane.f32.xlu0 %v1870
        %v1872 = vpop.xlane.xlu0 %1871
        %v1873 = vsel %vm326, %v1780, 0.0
        %1874 = vadd.xlane.f32.xlu0 %v1873
        %v1875 = vpop.xlane.xlu0 %1874
        %v1876 = vsel %vm326, %v1782, 0.0
        %1877 = vadd.xlane.f32.xlu0 %v1876
        %v1878 = vpop.xlane.xlu0 %1877
        %v1879 = vrcp.pop %v1785
        %v1880 = vrcp.pop %v1788
        %v1881 = vrcp.pop %v1791
        %v1882 = vrcp.pop %v1794
        %v1883 = vrcp.pop %v1797
        %v1884 = vrcp.pop %v1800
        %v1885 = vrcp.pop %v1803
        %v1886 = vrcp.pop %v1806
        %v1887 = vrcp.pop %v1809
        %v1888 = vrcp.pop %v1812
        %v1889 = vrcp.pop %v1815
        %v1890 = vrcp.pop %v1818
        %v1891 = vrcp.pop %v1821
        %v1892 = vrcp.pop %v1824
        %v1893 = vrcp.pop %v1827
        %v1894 = vrcp.pop %v1830
        %v1895 = vrcp.pop %v1833
        %v1896 = vrcp.pop %v1836
        %v1897 = vrcp.pop %v1839
        %v1898 = vrcp.pop %v1842
        %v1899 = vrcp.pop %v1845
        %v1900 = vrcp.pop %v1848
        %v1901 = vrcp.pop %v1851
        %v1902 = vrcp.pop %v1854
        %v1903 = vrcp.pop %v1857
        %v1904 = vrcp.pop %v1860
        %v1905 = vrcp.pop %v1863
        %v1906 = vrcp.pop %v1866
        %v1907 = vrcp.pop %v1869
        %v1908 = vrcp.pop %v1872
        %v1909 = vrcp.pop %v1875
        %v1910 = vrcp.pop %v1878
        %v1911 = vmul.f32 %v1720, %v1879
        %v1912 = vmul.f32 %v1722, %v1880
        %v1913 = vmul.f32 %v1724, %v1881
        %v1914 = vmul.f32 %v1726, %v1882
        %v1915 = vmul.f32 %v1728, %v1883
        %v1916 = vmul.f32 %v1730, %v1884
        %v1917 = vmul.f32 %v1732, %v1885
        %v1918 = vmul.f32 %v1734, %v1886
        %v1919 = vmul.f32 %v1736, %v1887
        %v1920 = vmul.f32 %v1738, %v1888
        %v1921 = vmul.f32 %v1740, %v1889
        %v1922 = vmul.f32 %v1742, %v1890
        %v1923 = vmul.f32 %v1744, %v1891
        %v1924 = vmul.f32 %v1746, %v1892
        %v1925 = vmul.f32 %v1748, %v1893
        %v1926 = vmul.f32 %v1750, %v1894
        %v1927 = vmul.f32 %v1752, %v1895
        %v1928 = vmul.f32 %v1754, %v1896
        %v1929 = vmul.f32 %v1756, %v1897
        %v1930 = vmul.f32 %v1758, %v1898
        %v1931 = vmul.f32 %v1760, %v1899
        %v1932 = vmul.f32 %v1762, %v1900
        %v1933 = vmul.f32 %v1764, %v1901
        %v1934 = vmul.f32 %v1766, %v1902
        %v1935 = vmul.f32 %v1768, %v1903
        %v1936 = vmul.f32 %v1770, %v1904
        %v1937 = vmul.f32 %v1772, %v1905
        %v1938 = vmul.f32 %v1774, %v1906
        %v1939 = vmul.f32 %v1776, %v1907
        %v1940 = vmul.f32 %v1778, %v1908
        %v1941 = vmul.f32 %v1780, %v1909
        %v1942 = vmul.f32 %v1782, %v1910
        %v1944 = vsel %vm326, %v1265, 0
        %v1947 = vsel %vm326, %v1266, 0
        %v1950 = vsel %vm326, %v1267, 0
        %v1953 = vsel %vm326, %v1268, 0
        %v1956 = vsel %vm326, %v1911, 0
        %v1959 = vsel %vm326, %v1912, 0
        %v1962 = vsel %vm326, %v1913, 0
        %v1965 = vsel %vm326, %v1914, 0
        %v1968 = vsel %vm326, %v1915, 0
        %v1971 = vsel %vm326, %v1916, 0
        %v1974 = vsel %vm326, %v1917, 0
        %v1977 = vsel %vm326, %v1918, 0
        %v1980 = vsel %vm326, %v1919, 0
        %v1983 = vsel %vm326, %v1920, 0
        %v1986 = vsel %vm326, %v1921, 0
        %v1989 = vsel %vm326, %v1922, 0
        %v1992 = vsel %vm326, %v1923, 0
        %v1995 = vsel %vm326, %v1924, 0
        %v1998 = vsel %vm326, %v1925, 0
        %v2001 = vsel %vm326, %v1926, 0
        %v2004 = vsel %vm326, %v1927, 0
        %v2007 = vsel %vm326, %v1928, 0
        %v2010 = vsel %vm326, %v1929, 0
        %v2013 = vsel %vm326, %v1930, 0
        %v2016 = vsel %vm326, %v1931, 0
        %v2019 = vsel %vm326, %v1932, 0
        %v2022 = vsel %vm326, %v1933, 0
        %v2025 = vsel %vm326, %v1934, 0
        %v2028 = vsel %vm326, %v1935, 0
        %v2031 = vsel %vm326, %v1936, 0
        %v2034 = vsel %vm326, %v1937, 0
        %v2037 = vsel %vm326, %v1938, 0
        %v2040 = vsel %vm326, %v1939, 0
        %v2043 = vsel %vm326, %v1940, 0
        %v2046 = vsel %vm326, %v1941, 0
        %v2049 = vsel %vm326, %v1942, 0
        %2051 = vmatprep.subr.mxu0 0.0
        %2052 = vmatpush1.xpose.msra.mxu0 %v1956
        %2053 = vmatprep.subr.mxu0 0.0
        %2054 = vmatpush1.xpose.msra.mxu0 %v1959
        %2055 = vmatprep.subr.mxu0 0.0
        %2056 = vmatpush1.xpose.msra.mxu0 %v1962
        %2057 = vmatprep.subr.mxu0 0.0
        %2058 = vmatpush1.xpose.msra.mxu0 %v1965
        %2059 = vmatprep.subr.mxu0 0.0
        %2060 = vmatpush1.xpose.msra.mxu0 %v1968
        %2061 = vmatprep.subr.mxu0 0.0
        %2062 = vmatpush1.xpose.msra.mxu0 %v1971
        %2063 = vmatprep.subr.mxu0 0.0
        %2064 = vmatpush1.xpose.msra.mxu0 %v1974
        %2065 = vmatprep.subr.mxu0 0.0
        %2066 = vmatpush1.xpose.msra.mxu0 %v1977
        %2067 = vmatprep.subr.mxu0 0.0
        %2068 = vmatpush1.xpose.msra.mxu0 %v1980
        %2069 = vmatprep.subr.mxu0 0.0
        %2070 = vmatpush1.xpose.msra.mxu0 %v1983
        %2071 = vmatprep.subr.mxu0 0.0
        %2072 = vmatpush1.xpose.msra.mxu0 %v1986
        %2073 = vmatprep.subr.mxu0 0.0
        %2074 = vmatpush1.xpose.msra.mxu0 %v1989
        %2075 = vmatprep.subr.mxu0 0.0
        %2076 = vmatpush1.xpose.msra.mxu0 %v1992
        %2077 = vmatprep.subr.mxu0 0.0
        %2078 = vmatpush1.xpose.msra.mxu0 %v1995
        %2079 = vmatprep.subr.mxu0 0.0
        %2080 = vmatpush1.xpose.msra.mxu0 %v1998
        %2081 = vmatprep.subr.mxu0 0.0
        %2082 = vmatpush1.xpose.msra.mxu0 %v2001
        %2083 = vmatprep.subr.mxu0 0.0
        %2084 = vmatpush1.xpose.msra.mxu0 %v2004
        %2085 = vmatprep.subr.mxu0 0.0
        %2086 = vmatpush1.xpose.msra.mxu0 %v2007
        %2087 = vmatprep.subr.mxu0 0.0
        %2088 = vmatpush1.xpose.msra.mxu0 %v2010
        %2089 = vmatprep.subr.mxu0 0.0
        %2090 = vmatpush1.xpose.msra.mxu0 %v2013
        %2091 = vmatprep.subr.mxu0 0.0
        %2092 = vmatpush1.xpose.msra.mxu0 %v2016
        %2093 = vmatprep.subr.mxu0 0.0
        %2094 = vmatpush1.xpose.msra.mxu0 %v2019
        %2095 = vmatprep.subr.mxu0 0.0
        %2096 = vmatpush1.xpose.msra.mxu0 %v2022
        %2097 = vmatprep.subr.mxu0 0.0
        %2098 = vmatpush1.xpose.msra.mxu0 %v2025
        %2099 = vmatprep.subr.mxu0 0.0
        %2100 = vmatpush1.xpose.msra.mxu0 %v2028
        %2101 = vmatprep.subr.mxu0 0.0
        %2102 = vmatpush1.xpose.msra.mxu0 %v2031
        %2103 = vmatprep.subr.mxu0 0.0
        %2104 = vmatpush1.xpose.msra.mxu0 %v2034
        %2105 = vmatprep.subr.mxu0 0.0
        %2106 = vmatpush1.xpose.msra.mxu0 %v2037
        %2107 = vmatprep.subr.mxu0 0.0
        %2108 = vmatpush1.xpose.msra.mxu0 %v2040
        %2109 = vmatprep.subr.mxu0 0.0
        %2110 = vmatpush1.xpose.msra.mxu0 %v2043
        %2111 = vmatprep.subr.mxu0 0.0
        %2112 = vmatpush1.xpose.msra.mxu0 %v2046
        %2113 = vmatprep.subr.mxu0 0.0
        %2114 = vmatpush1.xpose.msra.mxu0 %v2049
        %2115 = vmatprep.mubr.f32.mxu0 0.0
        %2116 = vmatmul.mubr.f32.gmra.mrb[0].mxu0 %v1944
        %v2117 = vpop.f32.mrb[0].mxu0
        %v2118 = vadd.f32 0.0, %v2117
        %v2119 = vpop.f32.mrb[0].mxu0
        %v2120 = vadd.f32 0.0, %v2119
        %2121 = vmatprep.mubr.f32.mxu0 0.0
        %2122 = vmatmul.mubr.f32.gmra.mrb[0].mxu0 %v1947
        %v2123 = vpop.f32.mrb[0].mxu0
        %v2124 = vadd.f32 0.0, %v2123
        %v2125 = vpop.f32.mrb[0].mxu0
        %v2126 = vadd.f32 0.0, %v2125
        %2127 = vmatprep.mubr.f32.mxu0 0.0
        %2128 = vmatmul.mubr.f32.gmra.mrb[0].mxu0 %v1950
        %v2129 = vpop.f32.mrb[0].mxu0
        %v2130 = vadd.f32 0.0, %v2129
        %v2131 = vpop.f32.mrb[0].mxu0
        %v2132 = vadd.f32 0.0, %v2131
        %2133 = vmatprep.mubr.f32.mxu0 0.0
        %2134 = vmatmul.mubr.f32.gmra.mrb[0].mxu0 %v1953
        %v2135 = vpop.f32.mrb[0].mxu0
        %v2136 = vadd.f32 0.0, %v2135
        %v2137 = vpop.f32.mrb[0].mxu0
        %v2138 = vadd.f32 0.0, %v2137
        %2139 = vdwg.mxu0
        %v2140 = vld [vmem:[%s5] sm:$0xff]
        %v2141 = vld [vmem:[%s5 + $0x8] sm:$0xff]
        %v2142 = vld [vmem:[%s5 + $0x10] sm:$0xff]
        %v2143 = vld [vmem:[%s5 + $0x18] sm:$0xff]
        %v2144 = vld [vmem:[%s5 + $0x20] sm:$0xff]
        %v2145 = vld [vmem:[%s5 + $0x28] sm:$0xff]
        %v2146 = vld [vmem:[%s5 + $0x30] sm:$0xff]
        %v2147 = vld [vmem:[%s5 + $0x38] sm:$0xff]
        %vm2148 = vcmask 261120
        %v2150 = vsel %vm2148, %v2140, 0
        %v2153 = vsel %vm2148, %v2141, 0
        %v2156 = vsel %vm2148, %v2142, 0
        %v2159 = vsel %vm2148, %v2143, 0
        %v2162 = vsel %vm2148, %v2144, 0
        %v2165 = vsel %vm2148, %v2145, 0
        %v2168 = vsel %vm2148, %v2146, 0
        %v2171 = vsel %vm2148, %v2147, 0
        %2173 = vmatprep.subr.mxu0 %v2120
        %2174 = vmatpush1.msra.mxu0 %v2118
        %2175 = vmatprep.subr.mxu0 %v2126
        %2176 = vmatpush1.msra.mxu0 %v2124
        %2177 = vmatprep.subr.mxu0 %v2132
        %2178 = vmatpush1.msra.mxu0 %v2130
        %2179 = vmatprep.subr.mxu0 %v2138
        %2180 = vmatpush1.msra.mxu0 %v2136
        %2181 = vmatprep.subr.mxu0 0.0
        %2182 = vmatpush1.msra.mxu0 0.0
        %2183 = vmatprep.subr.mxu0 0.0
        %2184 = vmatpush1.msra.mxu0 0.0
        %2185 = vmatprep.subr.mxu0 0.0
        %2186 = vmatpush1.msra.mxu0 0.0
        %2187 = vmatprep.subr.mxu0 0.0
        %2188 = vmatpush1.msra.mxu0 0.0
        %2189 = vmatprep.subr.mxu0 0.0
        %2190 = vmatpush1.msra.mxu0 0.0
        %2191 = vmatprep.subr.mxu0 0.0
        %2192 = vmatpush1.msra.mxu0 0.0
        %2193 = vmatprep.subr.mxu0 0.0
        %2194 = vmatpush1.msra.mxu0 0.0
        %2195 = vmatprep.subr.mxu0 0.0
        %2196 = vmatpush1.msra.mxu0 0.0
        %2197 = vmatprep.subr.mxu0 0.0
        %2198 = vmatpush1.msra.mxu0 0.0
        %2199 = vmatprep.subr.mxu0 0.0
        %2200 = vmatpush1.msra.mxu0 0.0
        %2201 = vmatprep.subr.mxu0 0.0
        %2202 = vmatpush1.msra.mxu0 0.0
        %2203 = vmatprep.subr.mxu0 0.0
        %2204 = vmatpush1.msra.mxu0 0.0
        %2205 = vmatprep.subr.mxu0 0.0
        %2206 = vmatpush1.msra.mxu0 0.0
        %2207 = vmatprep.subr.mxu0 0.0
        %2208 = vmatpush1.msra.mxu0 0.0
        %2209 = vmatprep.subr.mxu0 0.0
        %2210 = vmatpush1.msra.mxu0 0.0
        %2211 = vmatprep.subr.mxu0 0.0
        %2212 = vmatpush1.msra.mxu0 0.0
        %2213 = vmatprep.subr.mxu0 0.0
        %2214 = vmatpush1.msra.mxu0 0.0
        %2215 = vmatprep.subr.mxu0 0.0
        %2216 = vmatpush1.msra.mxu0 0.0
        %2217 = vmatprep.subr.mxu0 0.0
        %2218 = vmatpush1.msra.mxu0 0.0
        %2219 = vmatprep.subr.mxu0 0.0
        %2220 = vmatpush1.msra.mxu0 0.0
        %2221 = vmatprep.subr.mxu0 0.0
        %2222 = vmatpush1.msra.mxu0 0.0
        %2223 = vmatprep.subr.mxu0 0.0
        %2224 = vmatpush1.msra.mxu0 0.0
        %2225 = vmatprep.subr.mxu0 0.0
        %2226 = vmatpush1.msra.mxu0 0.0
        %2227 = vmatprep.subr.mxu0 0.0
        %2228 = vmatpush1.msra.mxu0 0.0
        %2229 = vmatprep.subr.mxu0 0.0
        %2230 = vmatpush1.msra.mxu0 0.0
        %2231 = vmatprep.subr.mxu0 0.0
        %2232 = vmatpush1.msra.mxu0 0.0
        %2233 = vmatprep.subr.mxu0 0.0
        %2234 = vmatpush1.msra.mxu0 0.0
        %2235 = vmatprep.subr.mxu0 0.0
        %2236 = vmatpush1.msra.mxu0 0.0
        %2237 = vmatprep.mubr.f32.mxu0 0.0
        %2238 = vmatmul.mubr.f32.gmra.mrb[0].mxu0 %v2150
        %v2239 = vpop.f32.mrb[0].mxu0
        %v2240 = vadd.f32 %v270, %v2239
        %v2241 = vpop.f32.mrb[0].mxu0
        %v2242 = vadd.f32 %v271, %v2241
        %2243 = vmatprep.mubr.f32.mxu0 0.0
        %2244 = vmatmul.mubr.f32.gmra.mrb[0].mxu0 %v2153
        %v2245 = vpop.f32.mrb[0].mxu0
        %v2246 = vadd.f32 %v272, %v2245
        %v2247 = vpop.f32.mrb[0].mxu0
        %v2248 = vadd.f32 %v273, %v2247
        %2249 = vmatprep.mubr.f32.mxu0 0.0
        %2250 = vmatmul.mubr.f32.gmra.mrb[0].mxu0 %v2156
        %v2251 = vpop.f32.mrb[0].mxu0
        %v2252 = vadd.f32 %v274, %v2251
        %v2253 = vpop.f32.mrb[0].mxu0
        %v2254 = vadd.f32 %v275, %v2253
        %2255 = vmatprep.mubr.f32.mxu0 0.0
        %2256 = vmatmul.mubr.f32.gmra.mrb[0].mxu0 %v2159
        %v2257 = vpop.f32.mrb[0].mxu0
        %v2258 = vadd.f32 %v276, %v2257
        %v2259 = vpop.f32.mrb[0].mxu0
        %v2260 = vadd.f32 %v277, %v2259
        %2261 = vmatprep.mubr.f32.mxu0 0.0
        %2262 = vmatmul.mubr.f32.gmra.mrb[0].mxu0 %v2162
        %v2263 = vpop.f32.mrb[0].mxu0
        %v2264 = vadd.f32 %v278, %v2263
        %v2265 = vpop.f32.mrb[0].mxu0
        %v2266 = vadd.f32 %v279, %v2265
        %2267 = vmatprep.mubr.f32.mxu0 0.0
        %2268 = vmatmul.mubr.f32.gmra.mrb[0].mxu0 %v2165
        %v2269 = vpop.f32.mrb[0].mxu0
        %v2270 = vadd.f32 %v280, %v2269
        %v2271 = vpop.f32.mrb[0].mxu0
        %v2272 = vadd.f32 %v281, %v2271
        %2273 = vmatprep.mubr.f32.mxu0 0.0
        %2274 = vmatmul.mubr.f32.gmra.mrb[0].mxu0 %v2168
        %v2275 = vpop.f32.mrb[0].mxu0
        %v2276 = vadd.f32 %v282, %v2275
        %v2277 = vpop.f32.mrb[0].mxu0
        %v2278 = vadd.f32 %v283, %v2277
        %2279 = vmatprep.mubr.f32.mxu0 0.0
        %2280 = vmatmul.mubr.f32.gmra.mrb[0].mxu0 %v2171
        %v2281 = vpop.f32.mrb[0].mxu0
        %v2282 = vadd.f32 %v284, %v2281
        %v2283 = vpop.f32.mrb[0].mxu0
        %v2284 = vadd.f32 %v285, %v2283
        %2285 = vdwg.mxu0
        %2286 = vst [vmem:[%s259] sm:$0xff] %v2240
        %2287 = vst [vmem:[%s259 + $0x8] sm:$0xff] %v2242
        %2288 = vst [vmem:[%s259 + $0x10] sm:$0xff] %v2246
        %2289 = vst [vmem:[%s259 + $0x18] sm:$0xff] %v2248
        %2290 = vst [vmem:[%s259 + $0x20] sm:$0xff] %v2252
        %2291 = vst [vmem:[%s259 + $0x28] sm:$0xff] %v2254
        %2292 = vst [vmem:[%s259 + $0x30] sm:$0xff] %v2258
        %2293 = vst [vmem:[%s259 + $0x38] sm:$0xff] %v2260
        %2294 = vst [vmem:[%s259 + $0x40] sm:$0xff] %v2264
        %2295 = vst [vmem:[%s259 + $0x48] sm:$0xff] %v2266
        %2296 = vst [vmem:[%s259 + $0x50] sm:$0xff] %v2270
        %2297 = vst [vmem:[%s259 + $0x58] sm:$0xff] %v2272
        %2298 = vst [vmem:[%s259 + $0x60] sm:$0xff] %v2276
        %2299 = vst [vmem:[%s259 + $0x68] sm:$0xff] %v2278
        %2300 = vst [vmem:[%s259 + $0x70] sm:$0xff] %v2282
        %2301 = vst [vmem:[%s259 + $0x78] sm:$0xff] %v2284
        %s2302 = sand.u32 %s164, 1
        %s2303 = scalar_lea.sflag [#allocation3], %s2302
        %s2304 = sand.u32 %s164, 1
        %s2305 = smul.addr %s2304, 128
        %s2306 = scalar_lea.vmem [#allocation2], %s2305
        // Predicated region
        $region45: #{tpu_custom_call.1} parent=43 // pred_check
          %p2307 = pneg %p174
        $region46: #{tpu_custom_call.1} parent=43 // pred_check_branch
          %2309 = sbr.rel (%p2307) target = $region48
        $region47: #{tpu_custom_call.1} parent=43 // pred_region
          %s2311 = ssub.s32 2048, 2048
          %2312 = vsyncadd %s2303, %s2311
          %s2313 = smul.addr %s20, 16
          %s2314 = smul.addr %s2313, 128
          %s2315 = scalar_lea.hbm %s6, %s2314
          %s2316 = sshll.u32 %s2306, 4
          %s2317 = int_to_ptr.vmem [resolvable:$true] %s2316
          %2322 = dma.vmem_to_hbm [thread:$0]  %s2317, 2048, %s2315, %s2303, 256, 256, 16
        $region48: #{tpu_custom_call.1} parent=43 // pred_fallthru
          _
      $region44: #{tpu_custom_call.1} parent=5 // pred_fallthru
        _
      %p2323 = scmp.le.s32.totalorder 2, %s15
      // Predicated region
      $region49: #{tpu_custom_call.1} parent=5 // pred_check
        %p2324 = pneg %p2323
      $region50: #{tpu_custom_call.1} parent=5 // pred_check_branch
        %2326 = sbr.rel (%p2324) target = $region52
      $region51: #{tpu_custom_call.1} parent=5 // pred_region
        %s2327 = ssub.s32 %s15, 2
        // Predicated region
        $region53: #{tpu_custom_call.1} parent=51 // pred_check
          %p2328 = pneg %p180
        $region54: #{tpu_custom_call.1} parent=51 // pred_check_branch
          %2330 = sbr.rel (%p2328) target = $region56
        $region55: #{tpu_custom_call.1} parent=51 // pred_region
          %s2331 = sand.u32 %s165, 1
          %s2332 = scalar_lea.sflag [#allocation3], %s2331
          %s2333 = sand.u32 %s165, 1
          %s2334 = smul.addr %s2333, 128
          %s2335 = scalar_lea.vmem [#allocation2], %s2334
          %2336 = dma.done %s2332, 2048
        $region56: #{tpu_custom_call.1} parent=51 // pred_fallthru
          _
      $region52: #{tpu_custom_call.1} parent=5 // pred_fallthru
        _
    $region6: #{tpu_custom_call.1} parent=1 // loop_footer
      %s19 = sadd.s32 1, %s15
    $region7: #{tpu_custom_call.1} parent=1 // loop_footer_branch
      %14 = sbr.rel target = $region3
    $region8: #{tpu_custom_call.1} parent=1 // loop_exit
      _
    %2337 = vsyncpa [#allocation3], 1
    %s2338 = scalar_lea.sflag [#allocation3], 1
    %2339 = vsyncpa %s2338, 1

</llo_original>
